<compile_context>
chip_gen: v7x
topology: tpu7x:2x2x1
jax: 0.10.0
libtpu: 0.0.40
codegen_flags: <defaults>
</compile_context>

<pallas_src>
import functools

import jax
import jax.numpy as jnp
from jax.experimental import pallas as pl
from jax.experimental.pallas import tpu as pltpu


def _round_up(x, m):
    return (x + m - 1) // m * m


def _vmem_capacity_bytes(default=64 * 1024 * 1024):
    # v7x: 64 MiB per TensorCore, v5e/v6e: 128 MiB. Default to the smallest so
    # sizing is safe even if the query is unavailable.
    try:
        cap = getattr(pltpu.get_tpu_info(), "vmem_capacity_bytes", None)
        if cap:
            return int(cap)
    except Exception:
        pass
    return default


def _gate_kernel(x1_ref, x2_ref, c1_ref, c2_ref, c0_ref, out_ref, *,
                 is_minus: bool, g: int, precision):
    x1 = x1_ref[...]                          # (TM, W) native dtype (streamed)
    x2 = x2_ref[...]                          # (TM, W)

    if g == 1:
        # Lane-dense rows: products in the native dtype on the VPU, f32
        # accumulation in the cross-lane reduce (XLU).  logit: (TM, 1) f32.
        logit = jnp.sum(x1 * c1_ref[...] + x2 * c2_ref[...],
                        axis=-1, keepdims=True, dtype=jnp.float32)
    else:
        # Lane-packed rows (W = g*D = 128): block-diagonal collapsed weights on
        # the otherwise-idle MXU.  Each logical row's logit comes out already
        # replicated across its own D lanes.  logit: (TM, W) f32.
        logit = (jnp.dot(x1, c1_ref[...], preferred_element_type=jnp.float32,
                         precision=precision)
                 + jnp.dot(x2, c2_ref[...], preferred_element_type=jnp.float32,
                           precision=precision))
    logit = logit + c0_ref[0]                 # scalar bias from SMEM

    gate = jax.nn.sigmoid(logit)              # EUP, f32
    if is_minus:
        gate = gate * 0.2
    gate = gate.astype(x1.dtype)              # blend in the native dtype

    if is_minus:
        res = x1 - gate * x2
    else:
        res = gate * x1 + (1.0 - gate) * x2
    out_ref[...] = res.astype(out_ref.dtype)


def gate_layer_pallas(x1, x2, w1, b1, w2, b2, *, is_minus=False, max_tile_m=512):
    """x1, x2: (..., D). w1: (D, 2D), b1: (D,), w2: (1, D), b2: (1,)."""
    orig_shape = x1.shape
    D = orig_shape[-1]
    dtype = jnp.result_type(x1.dtype, x2.dtype)

    x1f = x1.reshape(-1, D).astype(dtype)
    x2f = x2.reshape(-1, D).astype(dtype)
    N = x1f.shape[0]

    # ---- Collapse Linear1 -> Linear2 (exact: no nonlinearity in between). ----
    w1f = jnp.asarray(w1, jnp.float32)                  # (D, 2D)
    w2r = jnp.asarray(w2, jnp.float32).reshape(1, D)    # (1, D)
    v = (w2r @ w1f).reshape(2 * D)                      # (2D,)
    v1, v2 = v[:D], v[D:]
    c0 = (w2r[0] @ jnp.asarray(b1, jnp.float32)
          + jnp.asarray(b2, jnp.float32).reshape(())).reshape(1)  # (1,) -> SMEM

    # ---- Lane packing: g logical rows per 128-lane row when D divides 128. --
    g = 128 // D if (D < 128 and 128 % D == 0 and N % (128 // D) == 0) else 1
    W = g * D
    Np = N // g
    x1p = x1f.reshape(Np, W)        # free reshape (row-major layout unchanged)
    x2p = x2f.reshape(Np, W)

    if g == 1:
        coef1 = v1.reshape(1, D).astype(dtype)          # (1, D) resident rows
        coef2 = v2.reshape(1, D).astype(dtype)
    else:
        # Block-diagonal (W, W): x_packed @ coef gives each logical row's logit
        # replicated across its D lanes.
        def blockify(vv):
            return jnp.kron(jnp.eye(g, dtype=jnp.float32),
                            vv.reshape(D, 1) @ jnp.ones((1, D), jnp.float32))
        coef1 = blockify(v1).astype(dtype)              # (128, 128)
        coef2 = blockify(v2).astype(dtype)

    # Exact f32 contraction on the MXU passes when streaming f32; bf16 inputs
    # use the native bf16 MXU path with f32 accumulation.
    precision = jax.lax.Precision.HIGHEST if dtype == jnp.float32 else None

    # ---- Generation-aware VMEM sizing (v7x: 64 MiB cap). ----
    vmem_cap = _vmem_capacity_bytes()
    vmem_budget = min(32 * 1024 * 1024, vmem_cap // 4)        # 16 MiB on v7x
    vmem_limit = min(64 * 1024 * 1024, (vmem_cap * 5) // 8)   # 40 MiB on v7x
    itemsize = jnp.dtype(dtype).itemsize
    resident = 2 * coef1.size * itemsize
    # x1, x2, out double-buffered in the native dtype + ~4 tile-wide
    # f32-equivalent temporaries (logit/gate/blend) inside the body.
    bytes_per_row = 3 * 2 * W * itemsize + 4 * W * 4
    budget_rows = max(8, ((vmem_budget - resident) // bytes_per_row) // 8 * 8)

    # ---- Row tiling: no input padding; ragged last block is masked. ----
    if Np <= 8:
        tile_m = Np                                     # single full-extent block
    else:
        # Aim for >= ~8 grid steps so both v7x TensorCores and the pipeline
        # stay busy on this bandwidth-bound kernel.
        steps_tile = _round_up(pl.cdiv(Np, 8), 8)
        tile_m = max(8, min(max_tile_m, budget_rows, steps_tile))
    grid_m = pl.cdiv(Np, tile_m)

    kernel = functools.partial(_gate_kernel, is_minus=is_minus, g=g,
                               precision=precision)

    out = pl.pallas_call(
        kernel,
        out_shape=jax.ShapeDtypeStruct((Np, W), dtype),
        grid_spec=pltpu.PrefetchScalarGridSpec(
            num_scalar_prefetch=0,
            grid=(grid_m,),
            in_specs=[
                pl.BlockSpec((tile_m, W), lambda i: (i, 0)),        # x1 (streamed)
                pl.BlockSpec((tile_m, W), lambda i: (i, 0)),        # x2 (streamed)
                pl.BlockSpec(coef1.shape, lambda i: (0, 0)),        # collapsed W (resident, tiny)
                pl.BlockSpec(coef2.shape, lambda i: (0, 0)),        # collapsed W (resident, tiny)
                pl.BlockSpec(memory_space=pltpu.MemorySpace.SMEM),  # scalar bias c
            ],
            out_specs=pl.BlockSpec((tile_m, W), lambda i: (i, 0)),
        ),
        compiler_params=pltpu.CompilerParams(
            dimension_semantics=("parallel",),
            vmem_limit_bytes=int(vmem_limit),
        ),
    )(x1p, x2p, coef1, coef2, c0)

    return out.reshape(orig_shape).astype(dtype)


def gate_layer_ref(x1, x2, w1, b1, w2, b2, *, is_minus=False):
    """Pure-JAX reference mirroring the PyTorch forward."""
    cat = jnp.concatenate([x1, x2], axis=-1)
    h = cat @ w1.T + b1
    logit = h @ w2.T + b2
    gate = jax.nn.sigmoid(logit)
    if is_minus:
        return x1 - (0.2 * gate) * x2
    return gate * x1 + (1.0 - gate) * x2


if __name__ == "__main__":
    def make_inputs(key, batch, seq, hidden):
        k1, k2, k3, k4, k5, k6 = jax.random.split(key, 6)
        x1 = jax.random.normal(k1, (batch, seq, hidden), jnp.float32)
        x2 = jax.random.normal(k2, (batch, seq, hidden), jnp.float32)
        lim1 = 1.0 / jnp.sqrt(2.0 * hidden)   # nn.Linear default init scale
        lim2 = 1.0 / jnp.sqrt(float(hidden))
        w1 = jax.random.uniform(k3, (hidden, 2 * hidden), jnp.float32, -lim1, lim1)
        b1 = jax.random.uniform(k4, (hidden,), jnp.float32, -lim1, lim1)
        w2 = jax.random.uniform(k5, (1, hidden), jnp.float32, -lim2, lim2)
        b2 = jax.random.uniform(k6, (1,), jnp.float32, -lim2, lim2)
        return x1, x2, w1, b1, w2, b2

    key = jax.random.PRNGKey(0)
    k_a, k_b = jax.random.split(key)
    configs = [
        (k_a, 2, 64, 32),   # D=32: lane-packed path (g=4), aligned (8,128) blocks
        (k_b, 3, 5, 96),    # D=96: lane-dense path (g=1), ragged last grid block
    ]
    for cfg_key, batch, seq, hidden in configs:
        args = make_inputs(cfg_key, batch, seq, hidden)
        for is_minus in (False, True):
            out = gate_layer_pallas(*args, is_minus=is_minus)
            out = jax.block_until_ready(out)
            ref = gate_layer_ref(*args, is_minus=is_minus)
            assert out.shape == (batch, seq, hidden)
            # The collapsed projection reassociates the length-2D reduction and
            # may route it through MXU passes, so agreement with the two-matmul
            # reference is close but not bit-exact.
            assert jnp.allclose(out, ref, atol=2e-3, rtol=2e-3), (
                f"mismatch (hidden={hidden}, is_minus={is_minus})")
    print("KERNEL_OK")
</pallas_src>

<mosaic_0001>
module attributes {stable_mosaic.version = 11 : i64} {
  func.func @_gate_kernel(%arg0: i32, %arg1: memref<8x128xf32, #tpu.memory_space<vmem>>, %arg2: memref<8x128xf32, #tpu.memory_space<vmem>>, %arg3: memref<128x128xf32, #tpu.memory_space<vmem>>, %arg4: memref<128x128xf32, #tpu.memory_space<vmem>>, %arg5: memref<1xf32, #tpu.memory_space<smem>>, %arg6: memref<8x128xf32, #tpu.memory_space<vmem>>) attributes {dimension_semantics = [#tpu.dimension_semantics<parallel>], iteration_bounds = array<i64: 4>, scalar_prefetch = 0 : i64, scratch_operands = 0 : i64, tpu.core_type = #tpu.core_type<tc>, window_params = [{transform_indices = @transform_0, window_bounds = array<i64: 8, 128>}, {transform_indices = @transform_1, window_bounds = array<i64: 8, 128>}, {pipeline_mode = #tpu.pipeline_mode<synchronous>, transform_indices = @transform_2, window_bounds = array<i64: 128, 128>}, {pipeline_mode = #tpu.pipeline_mode<synchronous>, transform_indices = @transform_3, window_bounds = array<i64: 128, 128>}, {transform_indices = @transform_4, window_bounds = array<i64: 1>}, {transform_indices = @transform_5, window_bounds = array<i64: 8, 128>}]} {
    %c0 = arith.constant 0 : index
    %c0_0 = arith.constant 0 : index
    %0 = vector.load %arg1[%c0, %c0_0] : memref<8x128xf32, #tpu.memory_space<vmem>>, vector<8x128xf32>
    %c0_1 = arith.constant 0 : index
    %c0_2 = arith.constant 0 : index
    %1 = vector.load %arg2[%c0_1, %c0_2] : memref<8x128xf32, #tpu.memory_space<vmem>>, vector<8x128xf32>
    %c0_3 = arith.constant 0 : index
    %c0_4 = arith.constant 0 : index
    %2 = vector.load %arg3[%c0_3, %c0_4] : memref<128x128xf32, #tpu.memory_space<vmem>>, vector<128x128xf32>
    %cst = arith.constant dense<0.000000e+00> : vector<8x128xf32>
    %3 = tpu.matmul %0, %2, %cst {dimension_numbers = #tpu.dot_dimension_numbers<[1], [0], [0], [1], [0, 0, 1, 1], [], []>, precision = #tpu.contract_precision<fp32>} : vector<8x128xf32>, vector<128x128xf32>, vector<8x128xf32> -> vector<8x128xf32>
    %c0_5 = arith.constant 0 : index
    %c0_6 = arith.constant 0 : index
    %4 = vector.load %arg4[%c0_5, %c0_6] : memref<128x128xf32, #tpu.memory_space<vmem>>, vector<128x128xf32>
    %cst_7 = arith.constant dense<0.000000e+00> : vector<8x128xf32>
    %5 = tpu.matmul %1, %4, %cst_7 {dimension_numbers = #tpu.dot_dimension_numbers<[1], [0], [0], [1], [0, 0, 1, 1], [], []>, precision = #tpu.contract_precision<fp32>} : vector<8x128xf32>, vector<128x128xf32>, vector<8x128xf32> -> vector<8x128xf32>
    %6 = arith.addf %3, %5 : vector<8x128xf32>
    %c0_8 = arith.constant 0 : index
    %7 = memref.load %arg5[%c0_8] : memref<1xf32, #tpu.memory_space<smem>>
    %8 = vector.broadcast %7 : f32 to vector<8x128xf32>
    %9 = arith.addf %6, %8 : vector<8x128xf32>
    %10 = arith.negf %9 : vector<8x128xf32>
    %11 = math.exp %10 : vector<8x128xf32>
    %cst_9 = arith.constant 1.000000e+00 : f32
    %12 = vector.broadcast %cst_9 : f32 to vector<8x128xf32>
    %13 = arith.addf %12, %11 : vector<8x128xf32>
    %14 = arith.divf %12, %13 : vector<8x128xf32>
    %15 = arith.mulf %14, %0 : vector<8x128xf32>
    %cst_10 = arith.constant 1.000000e+00 : f32
    %16 = vector.broadcast %cst_10 : f32 to vector<8x128xf32>
    %17 = arith.subf %16, %14 : vector<8x128xf32>
    %18 = arith.mulf %17, %1 : vector<8x128xf32>
    %19 = arith.addf %15, %18 : vector<8x128xf32>
    %c0_11 = arith.constant 0 : index
    %c0_12 = arith.constant 0 : index
    %20 = vector.load %arg6[%c0_11, %c0_12] : memref<8x128xf32, #tpu.memory_space<vmem>>, vector<8x128xf32>
    tpu.vector_store %arg6[%c0_11, %c0_12], %19 {strides = array<i32>} : memref<8x128xf32, #tpu.memory_space<vmem>>, vector<8x128xf32>,
    return
  }
  func.func @transform_0(%arg0: i32) -> (i32, i32) {
    %c0_i32 = arith.constant 0 : i32
    %c0_i32_0 = arith.constant 0 : i32
    return %arg0, %c0_i32 : i32, i32
  }
  func.func @transform_1(%arg0: i32) -> (i32, i32) {
    %c0_i32 = arith.constant 0 : i32
    %c0_i32_0 = arith.constant 0 : i32
    return %arg0, %c0_i32 : i32, i32
  }
  func.func @transform_2(%arg0: i32) -> (i32, i32) {
    %c0_i32 = arith.constant 0 : i32
    %c0_i32_0 = arith.constant 0 : i32
    %c0_i32_1 = arith.constant 0 : i32
    return %c0_i32, %c0_i32_0 : i32, i32
  }
  func.func @transform_3(%arg0: i32) -> (i32, i32) {
    %c0_i32 = arith.constant 0 : i32
    %c0_i32_0 = arith.constant 0 : i32
    %c0_i32_1 = arith.constant 0 : i32
    return %c0_i32, %c0_i32_0 : i32, i32
  }
  func.func @transform_4(%arg0: i32) -> i32 {
    %c0_i32 = arith.constant 0 : i32
    %c0_i32_0 = arith.constant 0 : i32
    return %c0_i32 : i32
  }
  func.func @transform_5(%arg0: i32) -> (i32, i32) {
    %c0_i32 = arith.constant 0 : i32
    %c0_i32_0 = arith.constant 0 : i32
    return %arg0, %c0_i32 : i32, i32
  }
}

</mosaic_0001>

<llo_original>
// kernel: tpu_custom_call.1
$region0: #{tpu_custom_call.1}
  #allocation0 [shape = 'u32[]', space=smem, size = 0x4, offset = 0x4, fixed_abs, tag = 'smem constant byte address 0x4 - core index']
  #allocation1 [shape = 'u32[144,128]{1,0:T(1,128)}', space=vmem, size = 0x12000, scoped, tag = 'internal scratch']
  #allocation2 [shape = 'f32[1]{0:T(128)S(6)}', space=smem, size = 0x200, scoped, tag = 'scoped memory for tpu_custom_call.1']
  %s0 = inlined_call_operand.hbm [shape: f32[32,128], index: 0, kind: input, shape index: {}]
  %s1 = inlined_call_operand.hbm [shape: f32[32,128], index: 1, kind: input, shape index: {}]
  %s2 = inlined_call_operand.hbm [shape: f32[128,128], index: 2, kind: input, shape index: {}]
  %s3 = inlined_call_operand.hbm [shape: f32[128,128], index: 3, kind: input, shape index: {}]
  %s4 = inlined_call_operand.<no memory space> [shape: f32[1], index: 4, kind: input, shape index: {}]
  %s5 = inlined_call_operand.hbm [shape: f32[32,128], index: 5, kind: output, shape index: {}]
  %s6 = sld [smem:[#allocation0]]
  $region69: #{tpu_custom_call.1} parent=0
    _
  %s8 = ssub.s32 1, %s6
  %s9 = scalar_select 0, %s8, %s6
  %10 = sst [smem:[#allocation2]] %s4
  $region1: #{tpu_custom_call.1} parent=0
    #allocation3 [shape = 'u8[8192]{0}', space=vmem, size = 0x2000, scoped, tag = 'input window, operand 0']
    #allocation4 [shape = 's32[2]{0}', space=sflag, size = 0x8, scoped, tag = 'scoped memory for tpu_custom_call.1']
    #allocation5 [shape = 's32[2]{0}', space=sflag, size = 0x8, scoped, tag = 'scoped memory for tpu_custom_call.1']
    #allocation6 [shape = 'u8[8192]{0}', space=vmem, size = 0x2000, scoped, tag = 'input window, operand 1']
    #allocation7 [shape = 's32[2]{0}', space=sflag, size = 0x8, scoped, tag = 'scoped memory for tpu_custom_call.1']
    #allocation8 [shape = 'u8[65536]{0}', space=vmem, size = 0x10000, scoped, tag = 'input window, operand 2, single buffered']
    #allocation9 [shape = 'u8[65536]{0}', space=vmem, size = 0x10000, scoped, tag = 'input window, operand 3, single buffered']
    #allocation10 [shape = 's32[1]{0}', space=sflag, size = 0x4, scoped, tag = 'scoped memory for tpu_custom_call.1']
    #allocation11 [shape = 'u8[8192]{0}', space=vmem, size = 0x2000, scoped, tag = 'output window, operand 0']
    %11 = vsyncpa [#allocation4], 0
    %s12 = scalar_lea.sflag [#allocation4], 1
    %13 = vsyncpa %s12, 0
    %14 = vsyncpa [#allocation7], 0
    %s15 = scalar_lea.sflag [#allocation7], 1
    %16 = vsyncpa %s15, 0
    %17 = vsyncpa [#allocation10], 0
    %18 = vsyncpa [#allocation5], 0
    %s19 = scalar_lea.sflag [#allocation5], 1
    %20 = vsyncpa %s19, 0
    loop: start=0, step=1, limit=6
    $region2: #{tpu_custom_call.1} parent=1 // loop_pre_header
      _
    $region3: #{tpu_custom_call.1} parent=1 // loop_header
      %s22 = sphi 0, %s26
      %p23 = scmp.ge.s32.totalorder %s22, 6
      %s32 = sphi 0, %s34
      %s35 = sphi 0, %s32
      %s36 = sphi 0, %s35
      %s52 = sphi 0, %s36
      %s58 = sphi 0, %s60
      %s61 = sphi 0, %s58
      %s62 = sphi 0, %s61
      %s78 = sphi 0, %s62
      %s82 = sphi 0, %s82
      %s84 = sphi 0, %s82
      %s85 = sphi 0, %s84
      %s99 = sphi 0, %s85
      %s103 = sphi 0, %s103
      %s105 = sphi 0, %s103
      %s106 = sphi 0, %s105
      %s120 = sphi 0, %s106
      %s124 = sphi 0, %s124
      %s126 = sphi 0, %s124
      %s127 = sphi 0, %s126
      %s141 = sphi 0, %s127
      %s147 = sphi 0, %s149
      %s150 = sphi 0, %s147
      %s151 = sphi 0, %s150
      %s167 = sphi 0, %s151
    $region4: #{tpu_custom_call.1} parent=1 // loop_header_branch
      %25 = sbr.rel (%p23) target = $region8
    $region5: #{tpu_custom_call.1} parent=1 // loop_body
      %s27 = ssub.s32 %s22, 1
      %s28 = ssub.s32 %s22, 2
      %s29 = sadd.s32 %s22, 1
      %s30 = ssub.s32 %s22, %s29
      %p31 = scmp.eq.s32.totalorder %s30, 0
      %s33 = sadd.s32 %s32, 1
      %s34 = scalar_select %p31, %s32, %s33
      %p37 = pneg %p31
      %p38 = scmp.eq.s32.totalorder %s22, 3
      %p39 = por %p37, %p38
      %p40 = scmp.ne.s32.totalorder %s32, %s35
      %p41 = scmp.eq.s32.totalorder %s22, 0
      %p42 = por %p40, %p41
      %p43 = scmp.ne.s32.totalorder %s32, %s35
      %p44 = scmp.eq.s32.totalorder %s27, 3
      %p45 = por %p43, %p44
      %p46 = scmp.ne.s32.totalorder %s35, %s36
      %p47 = scmp.eq.s32.totalorder %s27, 0
      %p48 = por %p46, %p47
      %p49 = scmp.ne.s32.totalorder %s35, %s36
      %p50 = scmp.eq.s32.totalorder %s28, 3
      %p51 = por %p49, %p50
      %p53 = scmp.ne.s32.totalorder %s36, %s52
      %p54 = scmp.eq.s32.totalorder %s28, 0
      %p55 = por %p53, %p54
      %s56 = ssub.s32 %s22, %s29
      %p57 = scmp.eq.s32.totalorder %s56, 0
      %s59 = sadd.s32 %s58, 1
      %s60 = scalar_select %p57, %s58, %s59
      %p63 = pneg %p57
      %p64 = scmp.eq.s32.totalorder %s22, 3
      %p65 = por %p63, %p64
      %p66 = scmp.ne.s32.totalorder %s58, %s61
      %p67 = scmp.eq.s32.totalorder %s22, 0
      %p68 = por %p66, %p67
      %p69 = scmp.ne.s32.totalorder %s58, %s61
      %p70 = scmp.eq.s32.totalorder %s27, 3
      %p71 = por %p69, %p70
      %p72 = scmp.ne.s32.totalorder %s61, %s62
      %p73 = scmp.eq.s32.totalorder %s27, 0
      %p74 = por %p72, %p73
      %p75 = scmp.ne.s32.totalorder %s61, %s62
      %p76 = scmp.eq.s32.totalorder %s28, 3
      %p77 = por %p75, %p76
      %p79 = scmp.ne.s32.totalorder %s62, %s78
      %p80 = scmp.eq.s32.totalorder %s28, 0
      %p81 = por %p79, %p80
      %s83 = sadd.s32 %s82, 1
      %p86 = scmp.eq.s32.totalorder %s22, 3
      %p87 = scmp.ne.s32.totalorder %s82, %s84
      %p88 = scmp.eq.s32.totalorder %s22, 0
      %p89 = por %p87, %p88
      %p90 = scmp.ne.s32.totalorder %s82, %s84
      %p91 = scmp.eq.s32.totalorder %s27, 3
      %p92 = por %p90, %p91
      %p93 = scmp.ne.s32.totalorder %s84, %s85
      %p94 = scmp.eq.s32.totalorder %s27, 0
      %p95 = por %p93, %p94
      %p96 = scmp.ne.s32.totalorder %s84, %s85
      %p97 = scmp.eq.s32.totalorder %s28, 3
      %p98 = por %p96, %p97
      %p100 = scmp.ne.s32.totalorder %s85, %s99
      %p101 = scmp.eq.s32.totalorder %s28, 0
      %p102 = por %p100, %p101
      %s104 = sadd.s32 %s103, 1
      %p107 = scmp.eq.s32.totalorder %s22, 3
      %p108 = scmp.ne.s32.totalorder %s103, %s105
      %p109 = scmp.eq.s32.totalorder %s22, 0
      %p110 = por %p108, %p109
      %p111 = scmp.ne.s32.totalorder %s103, %s105
      %p112 = scmp.eq.s32.totalorder %s27, 3
      %p113 = por %p111, %p112
      %p114 = scmp.ne.s32.totalorder %s105, %s106
      %p115 = scmp.eq.s32.totalorder %s27, 0
      %p116 = por %p114, %p115
      %p117 = scmp.ne.s32.totalorder %s105, %s106
      %p118 = scmp.eq.s32.totalorder %s28, 3
      %p119 = por %p117, %p118
      %p121 = scmp.ne.s32.totalorder %s106, %s120
      %p122 = scmp.eq.s32.totalorder %s28, 0
      %p123 = por %p121, %p122
      %s125 = sadd.s32 %s124, 1
      %p128 = scmp.eq.s32.totalorder %s22, 3
      %p129 = scmp.ne.s32.totalorder %s124, %s126
      %p130 = scmp.eq.s32.totalorder %s22, 0
      %p131 = por %p129, %p130
      %p132 = scmp.ne.s32.totalorder %s124, %s126
      %p133 = scmp.eq.s32.totalorder %s27, 3
      %p134 = por %p132, %p133
      %p135 = scmp.ne.s32.totalorder %s126, %s127
      %p136 = scmp.eq.s32.totalorder %s27, 0
      %p137 = por %p135, %p136
      %p138 = scmp.ne.s32.totalorder %s126, %s127
      %p139 = scmp.eq.s32.totalorder %s28, 3
      %p140 = por %p138, %p139
      %p142 = scmp.ne.s32.totalorder %s127, %s141
      %p143 = scmp.eq.s32.totalorder %s28, 0
      %p144 = por %p142, %p143
      %s145 = ssub.s32 %s22, %s29
      %p146 = scmp.eq.s32.totalorder %s145, 0
      %s148 = sadd.s32 %s147, 1
      %s149 = scalar_select %p146, %s147, %s148
      %p152 = pneg %p146
      %p153 = scmp.eq.s32.totalorder %s22, 3
      %p154 = por %p152, %p153
      %p155 = scmp.ne.s32.totalorder %s147, %s150
      %p156 = scmp.eq.s32.totalorder %s22, 0
      %p157 = por %p155, %p156
      %p158 = scmp.ne.s32.totalorder %s147, %s150
      %p159 = scmp.eq.s32.totalorder %s27, 3
      %p160 = por %p158, %p159
      %p161 = scmp.ne.s32.totalorder %s150, %s151
      %p162 = scmp.eq.s32.totalorder %s27, 0
      %p163 = por %p161, %p162
      %p164 = scmp.ne.s32.totalorder %s150, %s151
      %p165 = scmp.eq.s32.totalorder %s28, 3
      %p166 = por %p164, %p165
      %p168 = scmp.ne.s32.totalorder %s151, %s167
      %p169 = scmp.eq.s32.totalorder %s28, 0
      %p170 = por %p168, %p169
      %p171 = scmp.le.s32.totalorder 1, %s22
      %p172 = scmp.lt.s32.totalorder %s22, 5
      %p173 = pnand %p171, %p172
      %p174 = pneg %p173
      // Predicated region
      $region9: #{tpu_custom_call.1} parent=5 // pred_check
        _
      $region10: #{tpu_custom_call.1} parent=5 // pred_check_branch
        %176 = sbr.rel (%p173) target = $region12
      $region11: #{tpu_custom_call.1} parent=5 // pred_region
        %s177 = ssub.s32 %s22, 1
        // Predicated region
        $region13: #{tpu_custom_call.1} parent=11 // pred_check
          %p178 = pneg %p95
        $region14: #{tpu_custom_call.1} parent=11 // pred_check_branch
          %180 = sbr.rel (%p178) target = $region16
        $region15: #{tpu_custom_call.1} parent=11 // pred_region
          %s182 = ssub.s32 2048, 2048
          %183 = vsyncadd [#allocation7], %s182
          %s184 = sshll.u32 [#allocation8], 4
          %s185 = int_to_ptr.vmem [resolvable:$true] %s184
          %190 = dma.hbm_to_vmem [thread:$0]  %s2, 2048, %s185, [#allocation7], 128, 128, 8
        $region16: #{tpu_custom_call.1} parent=11 // pred_fallthru
          _
        // Predicated region
        $region17: #{tpu_custom_call.1} parent=11 // pred_check
          %p191 = pneg %p116
        $region18: #{tpu_custom_call.1} parent=11 // pred_check_branch
          %193 = sbr.rel (%p191) target = $region20
        $region19: #{tpu_custom_call.1} parent=11 // pred_region
          %s195 = ssub.s32 2048, 2048
          %196 = vsyncadd [#allocation10], %s195
          %s197 = sshll.u32 [#allocation9], 4
          %s198 = int_to_ptr.vmem [resolvable:$true] %s197
          %203 = dma.hbm_to_vmem [thread:$0]  %s3, 2048, %s198, [#allocation10], 128, 128, 8
        $region20: #{tpu_custom_call.1} parent=11 // pred_fallthru
          _
        // Predicated region
        $region21: #{tpu_custom_call.1} parent=11 // pred_check
          %p204 = pneg %p137
        $region22: #{tpu_custom_call.1} parent=11 // pred_check_branch
          %206 = sbr.rel (%p204) target = $region24
        $region23: #{tpu_custom_call.1} parent=11 // pred_region
          _
        $region24: #{tpu_custom_call.1} parent=11 // pred_fallthru
          _
      $region12: #{tpu_custom_call.1} parent=5 // pred_fallthru
        _
      %p207 = scmp.lt.s32.totalorder %s22, 4
      // Predicated region
      $region25: #{tpu_custom_call.1} parent=5 // pred_check
        %p208 = pneg %p207
      $region26: #{tpu_custom_call.1} parent=5 // pred_check_branch
        %210 = sbr.rel (%p208) target = $region28
      $region27: #{tpu_custom_call.1} parent=5 // pred_region
        // Predicated region
        $region29: #{tpu_custom_call.1} parent=27 // pred_check
          %p211 = pneg %p42
        $region30: #{tpu_custom_call.1} parent=27 // pred_check_branch
          %213 = sbr.rel (%p211) target = $region32
        $region31: #{tpu_custom_call.1} parent=27 // pred_region
          %s214 = sand.u32 %s32, 1
          %s215 = scalar_lea.sflag [#allocation4], %s214
          %s216 = sand.u32 %s32, 1
          %s217 = smul.addr %s216, 8
          %s218 = scalar_lea.vmem [#allocation3], %s217
          %s220 = ssub.s32 128, 128
          %221 = vsyncadd %s215, %s220
          %s222 = smul.addr %s22, 128
          %s223 = scalar_lea.hbm %s0, %s222
          %s225 = sshll.u32 %s218, 4
          %s226 = int_to_ptr.vmem [resolvable:$true] %s225
          %228 = dma.hbm_to_vmem [thread:$0]  %s223, 128, %s226, %s215
        $region32: #{tpu_custom_call.1} parent=27 // pred_fallthru
          _
        // Predicated region
        $region33: #{tpu_custom_call.1} parent=27 // pred_check
          %p229 = pneg %p68
        $region34: #{tpu_custom_call.1} parent=27 // pred_check_branch
          %231 = sbr.rel (%p229) target = $region36
        $region35: #{tpu_custom_call.1} parent=27 // pred_region
          %s232 = sand.u32 %s22, 1
          %s233 = scalar_lea.sflag [#allocation7], %s232
          %s234 = sand.u32 %s58, 1
          %s235 = smul.addr %s234, 8
          %s236 = scalar_lea.vmem [#allocation6], %s235
          %s238 = ssub.s32 128, 128
          %239 = vsyncadd %s233, %s238
          %s240 = smul.addr %s22, 128
          %s241 = scalar_lea.hbm %s1, %s240
          %s243 = sshll.u32 %s236, 4
          %s244 = int_to_ptr.vmem [resolvable:$true] %s243
          %246 = dma.hbm_to_vmem [thread:$0]  %s241, 128, %s244, %s233
        $region36: #{tpu_custom_call.1} parent=27 // pred_fallthru
          _
      $region28: #{tpu_custom_call.1} parent=5 // pred_fallthru
        _
      %p247 = scmp.le.s32.totalorder 1, %s22
      %p248 = scmp.lt.s32.totalorder %s22, 5
      %p249 = pnand %p247, %p248
      %p250 = pneg %p249
      // Predicated region
      $region37: #{tpu_custom_call.1} parent=5 // pred_check
        _
      $region38: #{tpu_custom_call.1} parent=5 // pred_check_branch
        %252 = sbr.rel (%p249) target = $region40
      $region39: #{tpu_custom_call.1} parent=5 // pred_region
        %s253 = ssub.s32 %s22, 1
        %s254 = sand.u32 %s35, 1
        %s255 = scalar_lea.sflag [#allocation4], %s254
        %s256 = sand.u32 %s35, 1
        %s257 = smul.addr %s256, 8
        %s258 = scalar_lea.vmem [#allocation3], %s257
        // Predicated region
        $region41: #{tpu_custom_call.1} parent=39 // pred_check
          %p259 = pneg %p48
        $region42: #{tpu_custom_call.1} parent=39 // pred_check_branch
          %261 = sbr.rel (%p259) target = $region44
        $region43: #{tpu_custom_call.1} parent=39 // pred_region
          %262 = dma.done %s255, 128
        $region44: #{tpu_custom_call.1} parent=39 // pred_fallthru
          _
        %s263 = sand.u32 %s27, 1
        %s264 = scalar_lea.sflag [#allocation7], %s263
        %s265 = sand.u32 %s61, 1
        %s266 = smul.addr %s265, 8
        %s267 = scalar_lea.vmem [#allocation6], %s266
        // Predicated region
        $region45: #{tpu_custom_call.1} parent=39 // pred_check
          %p268 = pneg %p74
        $region46: #{tpu_custom_call.1} parent=39 // pred_check_branch
          %270 = sbr.rel (%p268) target = $region48
        $region47: #{tpu_custom_call.1} parent=39 // pred_region
          %271 = dma.done %s264, 128
        $region48: #{tpu_custom_call.1} parent=39 // pred_fallthru
          _
        // Predicated region
        $region49: #{tpu_custom_call.1} parent=39 // pred_check
          %p272 = pneg %p95
        $region50: #{tpu_custom_call.1} parent=39 // pred_check_branch
          %274 = sbr.rel (%p272) target = $region52
        $region51: #{tpu_custom_call.1} parent=39 // pred_region
          %275 = dma.done [#allocation7], 2048
        $region52: #{tpu_custom_call.1} parent=39 // pred_fallthru
          _
        // Predicated region
        $region53: #{tpu_custom_call.1} parent=39 // pred_check
          %p276 = pneg %p116
        $region54: #{tpu_custom_call.1} parent=39 // pred_check_branch
          %278 = sbr.rel (%p276) target = $region56
        $region55: #{tpu_custom_call.1} parent=39 // pred_region
          %279 = dma.done [#allocation10], 2048
        $region56: #{tpu_custom_call.1} parent=39 // pred_fallthru
          _
        %s280 = sand.u32 %s35, 1
        %s281 = scalar_lea.sflag [#allocation4], %s280
        %s282 = sand.u32 %s35, 1
        %s283 = smul.addr %s282, 8
        %s284 = scalar_lea.vmem [#allocation3], %s283
        %p285 = pneg %p48
        %p286 = pneg %p45
        %s287 = sand.u32 %s27, 1
        %s288 = scalar_lea.sflag [#allocation7], %s287
        %s289 = sand.u32 %s61, 1
        %s290 = smul.addr %s289, 8
        %s291 = scalar_lea.vmem [#allocation6], %s290
        %p292 = pneg %p74
        %p293 = pneg %p71
        %p294 = pneg %p95
        %p295 = pneg %p92
        %p296 = pneg %p116
        %p297 = pneg %p113
        %p298 = pneg %p137
        %p299 = pneg %p134
        %p300 = pneg %p163
        %p301 = pneg %p160
        %s302 = sand.u32 %s150, 1
        %s303 = scalar_lea.sflag [#allocation5], %s302
        %s304 = sand.u32 %s150, 1
        %s305 = smul.addr %s304, 8
        %s306 = scalar_lea.vmem [#allocation11], %s305
        %v307 = vld [vmem:[%s258] sm:$0xff]
        %v308 = vld [vmem:[%s267] sm:$0xff]
        %v309 = vld [vmem:[#allocation8] sm:$0xff]
        %v310 = vld [vmem:[#allocation8 + $0x8] sm:$0xff]
        %v311 = vld [vmem:[#allocation8 + $0x10] sm:$0xff]
        %v312 = vld [vmem:[#allocation8 + $0x18] sm:$0xff]
        %v313 = vld [vmem:[#allocation8 + $0x20] sm:$0xff]
        %v314 = vld [vmem:[#allocation8 + $0x28] sm:$0xff]
        %v315 = vld [vmem:[#allocation8 + $0x30] sm:$0xff]
        %v316 = vld [vmem:[#allocation8 + $0x38] sm:$0xff]
        %v317 = vld [vmem:[#allocation8 + $0x40] sm:$0xff]
        %v318 = vld [vmem:[#allocation8 + $0x48] sm:$0xff]
        %v319 = vld [vmem:[#allocation8 + $0x50] sm:$0xff]
        %v320 = vld [vmem:[#allocation8 + $0x58] sm:$0xff]
        %v321 = vld [vmem:[#allocation8 + $0x60] sm:$0xff]
        %v322 = vld [vmem:[#allocation8 + $0x68] sm:$0xff]
        %v323 = vld [vmem:[#allocation8 + $0x70] sm:$0xff]
        %v324 = vld [vmem:[#allocation8 + $0x78] sm:$0xff]
        %v325 = vld [vmem:[#allocation9] sm:$0xff]
        %v326 = vld [vmem:[#allocation9 + $0x8] sm:$0xff]
        %v327 = vld [vmem:[#allocation9 + $0x10] sm:$0xff]
        %v328 = vld [vmem:[#allocation9 + $0x18] sm:$0xff]
        %v329 = vld [vmem:[#allocation9 + $0x20] sm:$0xff]
        %v330 = vld [vmem:[#allocation9 + $0x28] sm:$0xff]
        %v331 = vld [vmem:[#allocation9 + $0x30] sm:$0xff]
        %v332 = vld [vmem:[#allocation9 + $0x38] sm:$0xff]
        %v333 = vld [vmem:[#allocation9 + $0x40] sm:$0xff]
        %v334 = vld [vmem:[#allocation9 + $0x48] sm:$0xff]
        %v335 = vld [vmem:[#allocation9 + $0x50] sm:$0xff]
        %v336 = vld [vmem:[#allocation9 + $0x58] sm:$0xff]
        %v337 = vld [vmem:[#allocation9 + $0x60] sm:$0xff]
        %v338 = vld [vmem:[#allocation9 + $0x68] sm:$0xff]
        %v339 = vld [vmem:[#allocation9 + $0x70] sm:$0xff]
        %v340 = vld [vmem:[#allocation9 + $0x78] sm:$0xff]
        %341 = vmatprep.subr.mxu0 0.0
        %v342 = vand.u32 %v325, 4294901760
        %343 = vmatpush1.msra.mxu0 %v342
        %344 = vmatprep.subr.mxu0 0.0
        %v345 = vand.u32 %v326, 4294901760
        %346 = vmatpush1.msra.mxu0 %v345
        %347 = vmatprep.subr.mxu0 0.0
        %v348 = vand.u32 %v327, 4294901760
        %349 = vmatpush1.msra.mxu0 %v348
        %350 = vmatprep.subr.mxu0 0.0
        %v351 = vand.u32 %v328, 4294901760
        %352 = vmatpush1.msra.mxu0 %v351
        %353 = vmatprep.subr.mxu0 0.0
        %v354 = vand.u32 %v329, 4294901760
        %355 = vmatpush1.msra.mxu0 %v354
        %356 = vmatprep.subr.mxu0 0.0
        %v357 = vand.u32 %v330, 4294901760
        %358 = vmatpush1.msra.mxu0 %v357
        %359 = vmatprep.subr.mxu0 0.0
        %v360 = vand.u32 %v331, 4294901760
        %361 = vmatpush1.msra.mxu0 %v360
        %362 = vmatprep.subr.mxu0 0.0
        %v363 = vand.u32 %v332, 4294901760
        %364 = vmatpush1.msra.mxu0 %v363
        %365 = vmatprep.subr.mxu0 0.0
        %v366 = vand.u32 %v333, 4294901760
        %367 = vmatpush1.msra.mxu0 %v366
        %368 = vmatprep.subr.mxu0 0.0
        %v369 = vand.u32 %v334, 4294901760
        %370 = vmatpush1.msra.mxu0 %v369
        %371 = vmatprep.subr.mxu0 0.0
        %v372 = vand.u32 %v335, 4294901760
        %373 = vmatpush1.msra.mxu0 %v372
        %374 = vmatprep.subr.mxu0 0.0
        %v375 = vand.u32 %v336, 4294901760
        %376 = vmatpush1.msra.mxu0 %v375
        %377 = vmatprep.subr.mxu0 0.0
        %v378 = vand.u32 %v337, 4294901760
        %379 = vmatpush1.msra.mxu0 %v378
        %380 = vmatprep.subr.mxu0 0.0
        %v381 = vand.u32 %v338, 4294901760
        %382 = vmatpush1.msra.mxu0 %v381
        %383 = vmatprep.subr.mxu0 0.0
        %v384 = vand.u32 %v339, 4294901760
        %385 = vmatpush1.msra.mxu0 %v384
        %386 = vmatprep.subr.mxu0 0.0
        %v387 = vand.u32 %v340, 4294901760
        %388 = vmatpush1.msra.mxu0 %v387
        %389 = vmatprep.subr.mxu0 0.0
        %390 = vmatpush1.msra.mxu0 0.0
        %391 = vmatprep.subr.mxu0 0.0
        %392 = vmatpush1.msra.mxu0 0.0
        %393 = vmatprep.subr.mxu0 0.0
        %394 = vmatpush1.msra.mxu0 0.0
        %395 = vmatprep.subr.mxu0 0.0
        %396 = vmatpush1.msra.mxu0 0.0
        %397 = vmatprep.subr.mxu0 0.0
        %398 = vmatpush1.msra.mxu0 0.0
        %399 = vmatprep.subr.mxu0 0.0
        %400 = vmatpush1.msra.mxu0 0.0
        %401 = vmatprep.subr.mxu0 0.0
        %402 = vmatpush1.msra.mxu0 0.0
        %403 = vmatprep.subr.mxu0 0.0
        %404 = vmatpush1.msra.mxu0 0.0
        %405 = vmatprep.subr.mxu0 0.0
        %406 = vmatpush1.msra.mxu0 0.0
        %407 = vmatprep.subr.mxu0 0.0
        %408 = vmatpush1.msra.mxu0 0.0
        %409 = vmatprep.subr.mxu0 0.0
        %410 = vmatpush1.msra.mxu0 0.0
        %411 = vmatprep.subr.mxu0 0.0
        %412 = vmatpush1.msra.mxu0 0.0
        %413 = vmatprep.subr.mxu0 0.0
        %414 = vmatpush1.msra.mxu0 0.0
        %415 = vmatprep.subr.mxu0 0.0
        %416 = vmatpush1.msra.mxu0 0.0
        %417 = vmatprep.subr.mxu0 0.0
        %418 = vmatpush1.msra.mxu0 0.0
        %419 = vmatprep.subr.mxu0 0.0
        %420 = vmatpush1.msra.mxu0 0.0
        %421 = vmatprep.mubr.f32.mxu0 0.0
        %v422 = vand.u32 %v308, 4294901760
        %v423 = vsub.f32 %v308, %v422
        %v424 = vand.u32 %v423, 4294901760
        %v425 = vsub.f32 %v423, %v424
        %v426 = vand.u32 %v425, 4294901760
        %427 = vmatmul.mubr.f32.gmra.mrb[0].mxu0 %v426
        %v428 = vpop.f32.mrb[0].mxu0
        %v429 = vadd.f32 0.0, %v428
        %v430 = vpop.f32.mrb[0].mxu0
        %431 = vdwg.mxu0
        %432 = vmatprep.subr.mxu0 0.0
        %v433 = vand.u32 %v325, 4294901760
        %v434 = vsub.f32 %v325, %v433
        %v435 = vand.u32 %v434, 4294901760
        %v436 = vsub.f32 %v434, %v435
        %v437 = vand.u32 %v436, 4294901760
        %438 = vmatpush1.msra.mxu0 %v437
        %439 = vmatprep.subr.mxu0 0.0
        %v440 = vand.u32 %v326, 4294901760
        %v441 = vsub.f32 %v326, %v440
        %v442 = vand.u32 %v441, 4294901760
        %v443 = vsub.f32 %v441, %v442
        %v444 = vand.u32 %v443, 4294901760
        %445 = vmatpush1.msra.mxu0 %v444
        %446 = vmatprep.subr.mxu0 0.0
        %v447 = vand.u32 %v327, 4294901760
        %v448 = vsub.f32 %v327, %v447
        %v449 = vand.u32 %v448, 4294901760
        %v450 = vsub.f32 %v448, %v449
        %v451 = vand.u32 %v450, 4294901760
        %452 = vmatpush1.msra.mxu0 %v451
        %453 = vmatprep.subr.mxu0 0.0
        %v454 = vand.u32 %v328, 4294901760
        %v455 = vsub.f32 %v328, %v454
        %v456 = vand.u32 %v455, 4294901760
        %v457 = vsub.f32 %v455, %v456
        %v458 = vand.u32 %v457, 4294901760
        %459 = vmatpush1.msra.mxu0 %v458
        %460 = vmatprep.subr.mxu0 0.0
        %v461 = vand.u32 %v329, 4294901760
        %v462 = vsub.f32 %v329, %v461
        %v463 = vand.u32 %v462, 4294901760
        %v464 = vsub.f32 %v462, %v463
        %v465 = vand.u32 %v464, 4294901760
        %466 = vmatpush1.msra.mxu0 %v465
        %467 = vmatprep.subr.mxu0 0.0
        %v468 = vand.u32 %v330, 4294901760
        %v469 = vsub.f32 %v330, %v468
        %v470 = vand.u32 %v469, 4294901760
        %v471 = vsub.f32 %v469, %v470
        %v472 = vand.u32 %v471, 4294901760
        %473 = vmatpush1.msra.mxu0 %v472
        %474 = vmatprep.subr.mxu0 0.0
        %v475 = vand.u32 %v331, 4294901760
        %v476 = vsub.f32 %v331, %v475
        %v477 = vand.u32 %v476, 4294901760
        %v478 = vsub.f32 %v476, %v477
        %v479 = vand.u32 %v478, 4294901760
        %480 = vmatpush1.msra.mxu0 %v479
        %481 = vmatprep.subr.mxu0 0.0
        %v482 = vand.u32 %v332, 4294901760
        %v483 = vsub.f32 %v332, %v482
        %v484 = vand.u32 %v483, 4294901760
        %v485 = vsub.f32 %v483, %v484
        %v486 = vand.u32 %v485, 4294901760
        %487 = vmatpush1.msra.mxu0 %v486
        %488 = vmatprep.subr.mxu0 0.0
        %v489 = vand.u32 %v333, 4294901760
        %v490 = vsub.f32 %v333, %v489
        %v491 = vand.u32 %v490, 4294901760
        %v492 = vsub.f32 %v490, %v491
        %v493 = vand.u32 %v492, 4294901760
        %494 = vmatpush1.msra.mxu0 %v493
        %495 = vmatprep.subr.mxu0 0.0
        %v496 = vand.u32 %v334, 4294901760
        %v497 = vsub.f32 %v334, %v496
        %v498 = vand.u32 %v497, 4294901760
        %v499 = vsub.f32 %v497, %v498
        %v500 = vand.u32 %v499, 4294901760
        %501 = vmatpush1.msra.mxu0 %v500
        %502 = vmatprep.subr.mxu0 0.0
        %v503 = vand.u32 %v335, 4294901760
        %v504 = vsub.f32 %v335, %v503
        %v505 = vand.u32 %v504, 4294901760
        %v506 = vsub.f32 %v504, %v505
        %v507 = vand.u32 %v506, 4294901760
        %508 = vmatpush1.msra.mxu0 %v507
        %509 = vmatprep.subr.mxu0 0.0
        %v510 = vand.u32 %v336, 4294901760
        %v511 = vsub.f32 %v336, %v510
        %v512 = vand.u32 %v511, 4294901760
        %v513 = vsub.f32 %v511, %v512
        %v514 = vand.u32 %v513, 4294901760
        %515 = vmatpush1.msra.mxu0 %v514
        %516 = vmatprep.subr.mxu0 0.0
        %v517 = vand.u32 %v337, 4294901760
        %v518 = vsub.f32 %v337, %v517
        %v519 = vand.u32 %v518, 4294901760
        %v520 = vsub.f32 %v518, %v519
        %v521 = vand.u32 %v520, 4294901760
        %522 = vmatpush1.msra.mxu0 %v521
        %523 = vmatprep.subr.mxu0 0.0
        %v524 = vand.u32 %v338, 4294901760
        %v525 = vsub.f32 %v338, %v524
        %v526 = vand.u32 %v525, 4294901760
        %v527 = vsub.f32 %v525, %v526
        %v528 = vand.u32 %v527, 4294901760
        %529 = vmatpush1.msra.mxu0 %v528
        %530 = vmatprep.subr.mxu0 0.0
        %v531 = vand.u32 %v339, 4294901760
        %v532 = vsub.f32 %v339, %v531
        %v533 = vand.u32 %v532, 4294901760
        %v534 = vsub.f32 %v532, %v533
        %v535 = vand.u32 %v534, 4294901760
        %536 = vmatpush1.msra.mxu0 %v535
        %537 = vmatprep.subr.mxu0 0.0
        %v538 = vand.u32 %v340, 4294901760
        %v539 = vsub.f32 %v340, %v538
        %v540 = vand.u32 %v539, 4294901760
        %v541 = vsub.f32 %v539, %v540
        %v542 = vand.u32 %v541, 4294901760
        %543 = vmatpush1.msra.mxu0 %v542
        %544 = vmatprep.subr.mxu0 0.0
        %545 = vmatpush1.msra.mxu0 0.0
        %546 = vmatprep.subr.mxu0 0.0
        %547 = vmatpush1.msra.mxu0 0.0
        %548 = vmatprep.subr.mxu0 0.0
        %549 = vmatpush1.msra.mxu0 0.0
        %550 = vmatprep.subr.mxu0 0.0
        %551 = vmatpush1.msra.mxu0 0.0
        %552 = vmatprep.subr.mxu0 0.0
        %553 = vmatpush1.msra.mxu0 0.0
        %554 = vmatprep.subr.mxu0 0.0
        %555 = vmatpush1.msra.mxu0 0.0
        %556 = vmatprep.subr.mxu0 0.0
        %557 = vmatpush1.msra.mxu0 0.0
        %558 = vmatprep.subr.mxu0 0.0
        %559 = vmatpush1.msra.mxu0 0.0
        %560 = vmatprep.subr.mxu0 0.0
        %561 = vmatpush1.msra.mxu0 0.0
        %562 = vmatprep.subr.mxu0 0.0
        %563 = vmatpush1.msra.mxu0 0.0
        %564 = vmatprep.subr.mxu0 0.0
        %565 = vmatpush1.msra.mxu0 0.0
        %566 = vmatprep.subr.mxu0 0.0
        %567 = vmatpush1.msra.mxu0 0.0
        %568 = vmatprep.subr.mxu0 0.0
        %569 = vmatpush1.msra.mxu0 0.0
        %570 = vmatprep.subr.mxu0 0.0
        %571 = vmatpush1.msra.mxu0 0.0
        %572 = vmatprep.subr.mxu0 0.0
        %573 = vmatpush1.msra.mxu0 0.0
        %574 = vmatprep.subr.mxu0 0.0
        %575 = vmatpush1.msra.mxu0 0.0
        %576 = vmatprep.mubr.f32.mxu0 0.0
        %v577 = vand.u32 %v308, 4294901760
        %578 = vmatmul.mubr.f32.gmra.mrb[0].mxu0 %v577
        %v579 = vpop.f32.mrb[0].mxu0
        %v580 = vadd.f32 %v429, %v579
        %v581 = vpop.f32.mrb[0].mxu0
        %582 = vdwg.mxu0
        %583 = vmatprep.subr.mxu0 0.0
        %v584 = vand.u32 %v325, 4294901760
        %v585 = vsub.f32 %v325, %v584
        %586 = vmatpush1.msra.mxu0 %v585
        %587 = vmatprep.subr.mxu0 0.0
        %v588 = vand.u32 %v326, 4294901760
        %v589 = vsub.f32 %v326, %v588
        %590 = vmatpush1.msra.mxu0 %v589
        %591 = vmatprep.subr.mxu0 0.0
        %v592 = vand.u32 %v327, 4294901760
        %v593 = vsub.f32 %v327, %v592
        %594 = vmatpush1.msra.mxu0 %v593
        %595 = vmatprep.subr.mxu0 0.0
        %v596 = vand.u32 %v328, 4294901760
        %v597 = vsub.f32 %v328, %v596
        %598 = vmatpush1.msra.mxu0 %v597
        %599 = vmatprep.subr.mxu0 0.0
        %v600 = vand.u32 %v329, 4294901760
        %v601 = vsub.f32 %v329, %v600
        %602 = vmatpush1.msra.mxu0 %v601
        %603 = vmatprep.subr.mxu0 0.0
        %v604 = vand.u32 %v330, 4294901760
        %v605 = vsub.f32 %v330, %v604
        %606 = vmatpush1.msra.mxu0 %v605
        %607 = vmatprep.subr.mxu0 0.0
        %v608 = vand.u32 %v331, 4294901760
        %v609 = vsub.f32 %v331, %v608
        %610 = vmatpush1.msra.mxu0 %v609
        %611 = vmatprep.subr.mxu0 0.0
        %v612 = vand.u32 %v332, 4294901760
        %v613 = vsub.f32 %v332, %v612
        %614 = vmatpush1.msra.mxu0 %v613
        %615 = vmatprep.subr.mxu0 0.0
        %v616 = vand.u32 %v333, 4294901760
        %v617 = vsub.f32 %v333, %v616
        %618 = vmatpush1.msra.mxu0 %v617
        %619 = vmatprep.subr.mxu0 0.0
        %v620 = vand.u32 %v334, 4294901760
        %v621 = vsub.f32 %v334, %v620
        %622 = vmatpush1.msra.mxu0 %v621
        %623 = vmatprep.subr.mxu0 0.0
        %v624 = vand.u32 %v335, 4294901760
        %v625 = vsub.f32 %v335, %v624
        %626 = vmatpush1.msra.mxu0 %v625
        %627 = vmatprep.subr.mxu0 0.0
        %v628 = vand.u32 %v336, 4294901760
        %v629 = vsub.f32 %v336, %v628
        %630 = vmatpush1.msra.mxu0 %v629
        %631 = vmatprep.subr.mxu0 0.0
        %v632 = vand.u32 %v337, 4294901760
        %v633 = vsub.f32 %v337, %v632
        %634 = vmatpush1.msra.mxu0 %v633
        %635 = vmatprep.subr.mxu0 0.0
        %v636 = vand.u32 %v338, 4294901760
        %v637 = vsub.f32 %v338, %v636
        %638 = vmatpush1.msra.mxu0 %v637
        %639 = vmatprep.subr.mxu0 0.0
        %v640 = vand.u32 %v339, 4294901760
        %v641 = vsub.f32 %v339, %v640
        %642 = vmatpush1.msra.mxu0 %v641
        %643 = vmatprep.subr.mxu0 0.0
        %v644 = vand.u32 %v340, 4294901760
        %v645 = vsub.f32 %v340, %v644
        %646 = vmatpush1.msra.mxu0 %v645
        %647 = vmatprep.subr.mxu0 0.0
        %648 = vmatpush1.msra.mxu0 0.0
        %649 = vmatprep.subr.mxu0 0.0
        %650 = vmatpush1.msra.mxu0 0.0
        %651 = vmatprep.subr.mxu0 0.0
        %652 = vmatpush1.msra.mxu0 0.0
        %653 = vmatprep.subr.mxu0 0.0
        %654 = vmatpush1.msra.mxu0 0.0
        %655 = vmatprep.subr.mxu0 0.0
        %656 = vmatpush1.msra.mxu0 0.0
        %657 = vmatprep.subr.mxu0 0.0
        %658 = vmatpush1.msra.mxu0 0.0
        %659 = vmatprep.subr.mxu0 0.0
        %660 = vmatpush1.msra.mxu0 0.0
        %661 = vmatprep.subr.mxu0 0.0
        %662 = vmatpush1.msra.mxu0 0.0
        %663 = vmatprep.subr.mxu0 0.0
        %664 = vmatpush1.msra.mxu0 0.0
        %665 = vmatprep.subr.mxu0 0.0
        %666 = vmatpush1.msra.mxu0 0.0
        %667 = vmatprep.subr.mxu0 0.0
        %668 = vmatpush1.msra.mxu0 0.0
        %669 = vmatprep.subr.mxu0 0.0
        %670 = vmatpush1.msra.mxu0 0.0
        %671 = vmatprep.subr.mxu0 0.0
        %672 = vmatpush1.msra.mxu0 0.0
        %673 = vmatprep.subr.mxu0 0.0
        %674 = vmatpush1.msra.mxu0 0.0
        %675 = vmatprep.subr.mxu0 0.0
        %676 = vmatpush1.msra.mxu0 0.0
        %677 = vmatprep.subr.mxu0 0.0
        %678 = vmatpush1.msra.mxu0 0.0
        %679 = vmatprep.mubr.f32.mxu0 0.0
        %v680 = vand.u32 %v308, 4294901760
        %v681 = vsub.f32 %v308, %v680
        %682 = vmatmul.mubr.f32.gmra.mrb[0].mxu0 %v681
        %v683 = vpop.f32.mrb[0].mxu0
        %v684 = vadd.f32 %v580, %v683
        %v685 = vpop.f32.mrb[0].mxu0
        %686 = vdwg.mxu0
        %687 = vmatprep.subr.mxu0 0.0
        %v688 = vand.u32 %v325, 4294901760
        %689 = vmatpush1.msra.mxu0 %v688
        %690 = vmatprep.subr.mxu0 0.0
        %v691 = vand.u32 %v326, 4294901760
        %692 = vmatpush1.msra.mxu0 %v691
        %693 = vmatprep.subr.mxu0 0.0
        %v694 = vand.u32 %v327, 4294901760
        %695 = vmatpush1.msra.mxu0 %v694
        %696 = vmatprep.subr.mxu0 0.0
        %v697 = vand.u32 %v328, 4294901760
        %698 = vmatpush1.msra.mxu0 %v697
        %699 = vmatprep.subr.mxu0 0.0
        %v700 = vand.u32 %v329, 4294901760
        %701 = vmatpush1.msra.mxu0 %v700
        %702 = vmatprep.subr.mxu0 0.0
        %v703 = vand.u32 %v330, 4294901760
        %704 = vmatpush1.msra.mxu0 %v703
        %705 = vmatprep.subr.mxu0 0.0
        %v706 = vand.u32 %v331, 4294901760
        %707 = vmatpush1.msra.mxu0 %v706
        %708 = vmatprep.subr.mxu0 0.0
        %v709 = vand.u32 %v332, 4294901760
        %710 = vmatpush1.msra.mxu0 %v709
        %711 = vmatprep.subr.mxu0 0.0
        %v712 = vand.u32 %v333, 4294901760
        %713 = vmatpush1.msra.mxu0 %v712
        %714 = vmatprep.subr.mxu0 0.0
        %v715 = vand.u32 %v334, 4294901760
        %716 = vmatpush1.msra.mxu0 %v715
        %717 = vmatprep.subr.mxu0 0.0
        %v718 = vand.u32 %v335, 4294901760
        %719 = vmatpush1.msra.mxu0 %v718
        %720 = vmatprep.subr.mxu0 0.0
        %v721 = vand.u32 %v336, 4294901760
        %722 = vmatpush1.msra.mxu0 %v721
        %723 = vmatprep.subr.mxu0 0.0
        %v724 = vand.u32 %v337, 4294901760
        %725 = vmatpush1.msra.mxu0 %v724
        %726 = vmatprep.subr.mxu0 0.0
        %v727 = vand.u32 %v338, 4294901760
        %728 = vmatpush1.msra.mxu0 %v727
        %729 = vmatprep.subr.mxu0 0.0
        %v730 = vand.u32 %v339, 4294901760
        %731 = vmatpush1.msra.mxu0 %v730
        %732 = vmatprep.subr.mxu0 0.0
        %v733 = vand.u32 %v340, 4294901760
        %734 = vmatpush1.msra.mxu0 %v733
        %735 = vmatprep.subr.mxu0 0.0
        %736 = vmatpush1.msra.mxu0 0.0
        %737 = vmatprep.subr.mxu0 0.0
        %738 = vmatpush1.msra.mxu0 0.0
        %739 = vmatprep.subr.mxu0 0.0
        %740 = vmatpush1.msra.mxu0 0.0
        %741 = vmatprep.subr.mxu0 0.0
        %742 = vmatpush1.msra.mxu0 0.0
        %743 = vmatprep.subr.mxu0 0.0
        %744 = vmatpush1.msra.mxu0 0.0
        %745 = vmatprep.subr.mxu0 0.0
        %746 = vmatpush1.msra.mxu0 0.0
        %747 = vmatprep.subr.mxu0 0.0
        %748 = vmatpush1.msra.mxu0 0.0
        %749 = vmatprep.subr.mxu0 0.0
        %750 = vmatpush1.msra.mxu0 0.0
        %751 = vmatprep.subr.mxu0 0.0
        %752 = vmatpush1.msra.mxu0 0.0
        %753 = vmatprep.subr.mxu0 0.0
        %754 = vmatpush1.msra.mxu0 0.0
        %755 = vmatprep.subr.mxu0 0.0
        %756 = vmatpush1.msra.mxu0 0.0
        %757 = vmatprep.subr.mxu0 0.0
        %758 = vmatpush1.msra.mxu0 0.0
        %759 = vmatprep.subr.mxu0 0.0
        %760 = vmatpush1.msra.mxu0 0.0
        %761 = vmatprep.subr.mxu0 0.0
        %762 = vmatpush1.msra.mxu0 0.0
        %763 = vmatprep.subr.mxu0 0.0
        %764 = vmatpush1.msra.mxu0 0.0
        %765 = vmatprep.subr.mxu0 0.0
        %766 = vmatpush1.msra.mxu0 0.0
        %767 = vmatprep.mubr.f32.mxu0 0.0
        %v768 = vand.u32 %v308, 4294901760
        %v769 = vsub.f32 %v308, %v768
        %v770 = vand.u32 %v769, 4294901760
        %771 = vmatmul.mubr.f32.gmra.mrb[0].mxu0 %v770
        %v772 = vpop.f32.mrb[0].mxu0
        %v773 = vadd.f32 %v684, %v772
        %v774 = vpop.f32.mrb[0].mxu0
        %775 = vdwg.mxu0
        %776 = vmatprep.subr.mxu0 0.0
        %v777 = vand.u32 %v325, 4294901760
        %v778 = vsub.f32 %v325, %v777
        %v779 = vand.u32 %v778, 4294901760
        %780 = vmatpush1.msra.mxu0 %v779
        %781 = vmatprep.subr.mxu0 0.0
        %v782 = vand.u32 %v326, 4294901760
        %v783 = vsub.f32 %v326, %v782
        %v784 = vand.u32 %v783, 4294901760
        %785 = vmatpush1.msra.mxu0 %v784
        %786 = vmatprep.subr.mxu0 0.0
        %v787 = vand.u32 %v327, 4294901760
        %v788 = vsub.f32 %v327, %v787
        %v789 = vand.u32 %v788, 4294901760
        %790 = vmatpush1.msra.mxu0 %v789
        %791 = vmatprep.subr.mxu0 0.0
        %v792 = vand.u32 %v328, 4294901760
        %v793 = vsub.f32 %v328, %v792
        %v794 = vand.u32 %v793, 4294901760
        %795 = vmatpush1.msra.mxu0 %v794
        %796 = vmatprep.subr.mxu0 0.0
        %v797 = vand.u32 %v329, 4294901760
        %v798 = vsub.f32 %v329, %v797
        %v799 = vand.u32 %v798, 4294901760
        %800 = vmatpush1.msra.mxu0 %v799
        %801 = vmatprep.subr.mxu0 0.0
        %v802 = vand.u32 %v330, 4294901760
        %v803 = vsub.f32 %v330, %v802
        %v804 = vand.u32 %v803, 4294901760
        %805 = vmatpush1.msra.mxu0 %v804
        %806 = vmatprep.subr.mxu0 0.0
        %v807 = vand.u32 %v331, 4294901760
        %v808 = vsub.f32 %v331, %v807
        %v809 = vand.u32 %v808, 4294901760
        %810 = vmatpush1.msra.mxu0 %v809
        %811 = vmatprep.subr.mxu0 0.0
        %v812 = vand.u32 %v332, 4294901760
        %v813 = vsub.f32 %v332, %v812
        %v814 = vand.u32 %v813, 4294901760
        %815 = vmatpush1.msra.mxu0 %v814
        %816 = vmatprep.subr.mxu0 0.0
        %v817 = vand.u32 %v333, 4294901760
        %v818 = vsub.f32 %v333, %v817
        %v819 = vand.u32 %v818, 4294901760
        %820 = vmatpush1.msra.mxu0 %v819
        %821 = vmatprep.subr.mxu0 0.0
        %v822 = vand.u32 %v334, 4294901760
        %v823 = vsub.f32 %v334, %v822
        %v824 = vand.u32 %v823, 4294901760
        %825 = vmatpush1.msra.mxu0 %v824
        %826 = vmatprep.subr.mxu0 0.0
        %v827 = vand.u32 %v335, 4294901760
        %v828 = vsub.f32 %v335, %v827
        %v829 = vand.u32 %v828, 4294901760
        %830 = vmatpush1.msra.mxu0 %v829
        %831 = vmatprep.subr.mxu0 0.0
        %v832 = vand.u32 %v336, 4294901760
        %v833 = vsub.f32 %v336, %v832
        %v834 = vand.u32 %v833, 4294901760
        %835 = vmatpush1.msra.mxu0 %v834
        %836 = vmatprep.subr.mxu0 0.0
        %v837 = vand.u32 %v337, 4294901760
        %v838 = vsub.f32 %v337, %v837
        %v839 = vand.u32 %v838, 4294901760
        %840 = vmatpush1.msra.mxu0 %v839
        %841 = vmatprep.subr.mxu0 0.0
        %v842 = vand.u32 %v338, 4294901760
        %v843 = vsub.f32 %v338, %v842
        %v844 = vand.u32 %v843, 4294901760
        %845 = vmatpush1.msra.mxu0 %v844
        %846 = vmatprep.subr.mxu0 0.0
        %v847 = vand.u32 %v339, 4294901760
        %v848 = vsub.f32 %v339, %v847
        %v849 = vand.u32 %v848, 4294901760
        %850 = vmatpush1.msra.mxu0 %v849
        %851 = vmatprep.subr.mxu0 0.0
        %v852 = vand.u32 %v340, 4294901760
        %v853 = vsub.f32 %v340, %v852
        %v854 = vand.u32 %v853, 4294901760
        %855 = vmatpush1.msra.mxu0 %v854
        %856 = vmatprep.subr.mxu0 0.0
        %857 = vmatpush1.msra.mxu0 0.0
        %858 = vmatprep.subr.mxu0 0.0
        %859 = vmatpush1.msra.mxu0 0.0
        %860 = vmatprep.subr.mxu0 0.0
        %861 = vmatpush1.msra.mxu0 0.0
        %862 = vmatprep.subr.mxu0 0.0
        %863 = vmatpush1.msra.mxu0 0.0
        %864 = vmatprep.subr.mxu0 0.0
        %865 = vmatpush1.msra.mxu0 0.0
        %866 = vmatprep.subr.mxu0 0.0
        %867 = vmatpush1.msra.mxu0 0.0
        %868 = vmatprep.subr.mxu0 0.0
        %869 = vmatpush1.msra.mxu0 0.0
        %870 = vmatprep.subr.mxu0 0.0
        %871 = vmatpush1.msra.mxu0 0.0
        %872 = vmatprep.subr.mxu0 0.0
        %873 = vmatpush1.msra.mxu0 0.0
        %874 = vmatprep.subr.mxu0 0.0
        %875 = vmatpush1.msra.mxu0 0.0
        %876 = vmatprep.subr.mxu0 0.0
        %877 = vmatpush1.msra.mxu0 0.0
        %878 = vmatprep.subr.mxu0 0.0
        %879 = vmatpush1.msra.mxu0 0.0
        %880 = vmatprep.subr.mxu0 0.0
        %881 = vmatpush1.msra.mxu0 0.0
        %882 = vmatprep.subr.mxu0 0.0
        %883 = vmatpush1.msra.mxu0 0.0
        %884 = vmatprep.subr.mxu0 0.0
        %885 = vmatpush1.msra.mxu0 0.0
        %886 = vmatprep.subr.mxu0 0.0
        %887 = vmatpush1.msra.mxu0 0.0
        %888 = vmatprep.mubr.f32.mxu0 0.0
        %v889 = vand.u32 %v308, 4294901760
        %890 = vmatmul.mubr.f32.gmra.mrb[0].mxu0 %v889
        %v891 = vpop.f32.mrb[0].mxu0
        %v892 = vadd.f32 %v773, %v891
        %v893 = vpop.f32.mrb[0].mxu0
        %894 = vdwg.mxu0
        %895 = vmatprep.subr.mxu0 0.0
        %v896 = vand.u32 %v325, 4294901760
        %897 = vmatpush1.msra.mxu0 %v896
        %898 = vmatprep.subr.mxu0 0.0
        %v899 = vand.u32 %v326, 4294901760
        %900 = vmatpush1.msra.mxu0 %v899
        %901 = vmatprep.subr.mxu0 0.0
        %v902 = vand.u32 %v327, 4294901760
        %903 = vmatpush1.msra.mxu0 %v902
        %904 = vmatprep.subr.mxu0 0.0
        %v905 = vand.u32 %v328, 4294901760
        %906 = vmatpush1.msra.mxu0 %v905
        %907 = vmatprep.subr.mxu0 0.0
        %v908 = vand.u32 %v329, 4294901760
        %909 = vmatpush1.msra.mxu0 %v908
        %910 = vmatprep.subr.mxu0 0.0
        %v911 = vand.u32 %v330, 4294901760
        %912 = vmatpush1.msra.mxu0 %v911
        %913 = vmatprep.subr.mxu0 0.0
        %v914 = vand.u32 %v331, 4294901760
        %915 = vmatpush1.msra.mxu0 %v914
        %916 = vmatprep.subr.mxu0 0.0
        %v917 = vand.u32 %v332, 4294901760
        %918 = vmatpush1.msra.mxu0 %v917
        %919 = vmatprep.subr.mxu0 0.0
        %v920 = vand.u32 %v333, 4294901760
        %921 = vmatpush1.msra.mxu0 %v920
        %922 = vmatprep.subr.mxu0 0.0
        %v923 = vand.u32 %v334, 4294901760
        %924 = vmatpush1.msra.mxu0 %v923
        %925 = vmatprep.subr.mxu0 0.0
        %v926 = vand.u32 %v335, 4294901760
        %927 = vmatpush1.msra.mxu0 %v926
        %928 = vmatprep.subr.mxu0 0.0
        %v929 = vand.u32 %v336, 4294901760
        %930 = vmatpush1.msra.mxu0 %v929
        %931 = vmatprep.subr.mxu0 0.0
        %v932 = vand.u32 %v337, 4294901760
        %933 = vmatpush1.msra.mxu0 %v932
        %934 = vmatprep.subr.mxu0 0.0
        %v935 = vand.u32 %v338, 4294901760
        %936 = vmatpush1.msra.mxu0 %v935
        %937 = vmatprep.subr.mxu0 0.0
        %v938 = vand.u32 %v339, 4294901760
        %939 = vmatpush1.msra.mxu0 %v938
        %940 = vmatprep.subr.mxu0 0.0
        %v941 = vand.u32 %v340, 4294901760
        %942 = vmatpush1.msra.mxu0 %v941
        %943 = vmatprep.subr.mxu0 0.0
        %944 = vmatpush1.msra.mxu0 0.0
        %945 = vmatprep.subr.mxu0 0.0
        %946 = vmatpush1.msra.mxu0 0.0
        %947 = vmatprep.subr.mxu0 0.0
        %948 = vmatpush1.msra.mxu0 0.0
        %949 = vmatprep.subr.mxu0 0.0
        %950 = vmatpush1.msra.mxu0 0.0
        %951 = vmatprep.subr.mxu0 0.0
        %952 = vmatpush1.msra.mxu0 0.0
        %953 = vmatprep.subr.mxu0 0.0
        %954 = vmatpush1.msra.mxu0 0.0
        %955 = vmatprep.subr.mxu0 0.0
        %956 = vmatpush1.msra.mxu0 0.0
        %957 = vmatprep.subr.mxu0 0.0
        %958 = vmatpush1.msra.mxu0 0.0
        %959 = vmatprep.subr.mxu0 0.0
        %960 = vmatpush1.msra.mxu0 0.0
        %961 = vmatprep.subr.mxu0 0.0
        %962 = vmatpush1.msra.mxu0 0.0
        %963 = vmatprep.subr.mxu0 0.0
        %964 = vmatpush1.msra.mxu0 0.0
        %965 = vmatprep.subr.mxu0 0.0
        %966 = vmatpush1.msra.mxu0 0.0
        %967 = vmatprep.subr.mxu0 0.0
        %968 = vmatpush1.msra.mxu0 0.0
        %969 = vmatprep.subr.mxu0 0.0
        %970 = vmatpush1.msra.mxu0 0.0
        %971 = vmatprep.subr.mxu0 0.0
        %972 = vmatpush1.msra.mxu0 0.0
        %973 = vmatprep.subr.mxu0 0.0
        %974 = vmatpush1.msra.mxu0 0.0
        %975 = vmatprep.mubr.f32.mxu0 0.0
        %v976 = vand.u32 %v308, 4294901760
        %977 = vmatmul.mubr.f32.gmra.mrb[0].mxu0 %v976
        %v978 = vpop.f32.mrb[0].mxu0
        %v979 = vadd.f32 %v892, %v978
        %v980 = vpop.f32.mrb[0].mxu0
        %981 = vdwg.mxu0
        %982 = vmatprep.subr.mxu0 0.0
        %v983 = vand.u32 %v309, 4294901760
        %984 = vmatpush1.msra.mxu0 %v983
        %985 = vmatprep.subr.mxu0 0.0
        %v986 = vand.u32 %v310, 4294901760
        %987 = vmatpush1.msra.mxu0 %v986
        %988 = vmatprep.subr.mxu0 0.0
        %v989 = vand.u32 %v311, 4294901760
        %990 = vmatpush1.msra.mxu0 %v989
        %991 = vmatprep.subr.mxu0 0.0
        %v992 = vand.u32 %v312, 4294901760
        %993 = vmatpush1.msra.mxu0 %v992
        %994 = vmatprep.subr.mxu0 0.0
        %v995 = vand.u32 %v313, 4294901760
        %996 = vmatpush1.msra.mxu0 %v995
        %997 = vmatprep.subr.mxu0 0.0
        %v998 = vand.u32 %v314, 4294901760
        %999 = vmatpush1.msra.mxu0 %v998
        %1000 = vmatprep.subr.mxu0 0.0
        %v1001 = vand.u32 %v315, 4294901760
        %1002 = vmatpush1.msra.mxu0 %v1001
        %1003 = vmatprep.subr.mxu0 0.0
        %v1004 = vand.u32 %v316, 4294901760
        %1005 = vmatpush1.msra.mxu0 %v1004
        %1006 = vmatprep.subr.mxu0 0.0
        %v1007 = vand.u32 %v317, 4294901760
        %1008 = vmatpush1.msra.mxu0 %v1007
        %1009 = vmatprep.subr.mxu0 0.0
        %v1010 = vand.u32 %v318, 4294901760
        %1011 = vmatpush1.msra.mxu0 %v1010
        %1012 = vmatprep.subr.mxu0 0.0
        %v1013 = vand.u32 %v319, 4294901760
        %1014 = vmatpush1.msra.mxu0 %v1013
        %1015 = vmatprep.subr.mxu0 0.0
        %v1016 = vand.u32 %v320, 4294901760
        %1017 = vmatpush1.msra.mxu0 %v1016
        %1018 = vmatprep.subr.mxu0 0.0
        %v1019 = vand.u32 %v321, 4294901760
        %1020 = vmatpush1.msra.mxu0 %v1019
        %1021 = vmatprep.subr.mxu0 0.0
        %v1022 = vand.u32 %v322, 4294901760
        %1023 = vmatpush1.msra.mxu0 %v1022
        %1024 = vmatprep.subr.mxu0 0.0
        %v1025 = vand.u32 %v323, 4294901760
        %1026 = vmatpush1.msra.mxu0 %v1025
        %1027 = vmatprep.subr.mxu0 0.0
        %v1028 = vand.u32 %v324, 4294901760
        %1029 = vmatpush1.msra.mxu0 %v1028
        %1030 = vmatprep.subr.mxu0 0.0
        %1031 = vmatpush1.msra.mxu0 0.0
        %1032 = vmatprep.subr.mxu0 0.0
        %1033 = vmatpush1.msra.mxu0 0.0
        %1034 = vmatprep.subr.mxu0 0.0
        %1035 = vmatpush1.msra.mxu0 0.0
        %1036 = vmatprep.subr.mxu0 0.0
        %1037 = vmatpush1.msra.mxu0 0.0
        %1038 = vmatprep.subr.mxu0 0.0
        %1039 = vmatpush1.msra.mxu0 0.0
        %1040 = vmatprep.subr.mxu0 0.0
        %1041 = vmatpush1.msra.mxu0 0.0
        %1042 = vmatprep.subr.mxu0 0.0
        %1043 = vmatpush1.msra.mxu0 0.0
        %1044 = vmatprep.subr.mxu0 0.0
        %1045 = vmatpush1.msra.mxu0 0.0
        %1046 = vmatprep.subr.mxu0 0.0
        %1047 = vmatpush1.msra.mxu0 0.0
        %1048 = vmatprep.subr.mxu0 0.0
        %1049 = vmatpush1.msra.mxu0 0.0
        %1050 = vmatprep.subr.mxu0 0.0
        %1051 = vmatpush1.msra.mxu0 0.0
        %1052 = vmatprep.subr.mxu0 0.0
        %1053 = vmatpush1.msra.mxu0 0.0
        %1054 = vmatprep.subr.mxu0 0.0
        %1055 = vmatpush1.msra.mxu0 0.0
        %1056 = vmatprep.subr.mxu0 0.0
        %1057 = vmatpush1.msra.mxu0 0.0
        %1058 = vmatprep.subr.mxu0 0.0
        %1059 = vmatpush1.msra.mxu0 0.0
        %1060 = vmatprep.subr.mxu0 0.0
        %1061 = vmatpush1.msra.mxu0 0.0
        %1062 = vmatprep.mubr.f32.mxu0 0.0
        %v1063 = vand.u32 %v307, 4294901760
        %v1064 = vsub.f32 %v307, %v1063
        %v1065 = vand.u32 %v1064, 4294901760
        %v1066 = vsub.f32 %v1064, %v1065
        %v1067 = vand.u32 %v1066, 4294901760
        %1068 = vmatmul.mubr.f32.gmra.mrb[0].mxu0 %v1067
        %v1069 = vpop.f32.mrb[0].mxu0
        %v1070 = vadd.f32 %v979, %v1069
        %v1071 = vpop.f32.mrb[0].mxu0
        %1072 = vdwg.mxu0
        %1073 = vmatprep.subr.mxu0 0.0
        %v1074 = vand.u32 %v309, 4294901760
        %v1075 = vsub.f32 %v309, %v1074
        %v1076 = vand.u32 %v1075, 4294901760
        %v1077 = vsub.f32 %v1075, %v1076
        %v1078 = vand.u32 %v1077, 4294901760
        %1079 = vmatpush1.msra.mxu0 %v1078
        %1080 = vmatprep.subr.mxu0 0.0
        %v1081 = vand.u32 %v310, 4294901760
        %v1082 = vsub.f32 %v310, %v1081
        %v1083 = vand.u32 %v1082, 4294901760
        %v1084 = vsub.f32 %v1082, %v1083
        %v1085 = vand.u32 %v1084, 4294901760
        %1086 = vmatpush1.msra.mxu0 %v1085
        %1087 = vmatprep.subr.mxu0 0.0
        %v1088 = vand.u32 %v311, 4294901760
        %v1089 = vsub.f32 %v311, %v1088
        %v1090 = vand.u32 %v1089, 4294901760
        %v1091 = vsub.f32 %v1089, %v1090
        %v1092 = vand.u32 %v1091, 4294901760
        %1093 = vmatpush1.msra.mxu0 %v1092
        %1094 = vmatprep.subr.mxu0 0.0
        %v1095 = vand.u32 %v312, 4294901760
        %v1096 = vsub.f32 %v312, %v1095
        %v1097 = vand.u32 %v1096, 4294901760
        %v1098 = vsub.f32 %v1096, %v1097
        %v1099 = vand.u32 %v1098, 4294901760
        %1100 = vmatpush1.msra.mxu0 %v1099
        %1101 = vmatprep.subr.mxu0 0.0
        %v1102 = vand.u32 %v313, 4294901760
        %v1103 = vsub.f32 %v313, %v1102
        %v1104 = vand.u32 %v1103, 4294901760
        %v1105 = vsub.f32 %v1103, %v1104
        %v1106 = vand.u32 %v1105, 4294901760
        %1107 = vmatpush1.msra.mxu0 %v1106
        %1108 = vmatprep.subr.mxu0 0.0
        %v1109 = vand.u32 %v314, 4294901760
        %v1110 = vsub.f32 %v314, %v1109
        %v1111 = vand.u32 %v1110, 4294901760
        %v1112 = vsub.f32 %v1110, %v1111
        %v1113 = vand.u32 %v1112, 4294901760
        %1114 = vmatpush1.msra.mxu0 %v1113
        %1115 = vmatprep.subr.mxu0 0.0
        %v1116 = vand.u32 %v315, 4294901760
        %v1117 = vsub.f32 %v315, %v1116
        %v1118 = vand.u32 %v1117, 4294901760
        %v1119 = vsub.f32 %v1117, %v1118
        %v1120 = vand.u32 %v1119, 4294901760
        %1121 = vmatpush1.msra.mxu0 %v1120
        %1122 = vmatprep.subr.mxu0 0.0
        %v1123 = vand.u32 %v316, 4294901760
        %v1124 = vsub.f32 %v316, %v1123
        %v1125 = vand.u32 %v1124, 4294901760
        %v1126 = vsub.f32 %v1124, %v1125
        %v1127 = vand.u32 %v1126, 4294901760
        %1128 = vmatpush1.msra.mxu0 %v1127
        %1129 = vmatprep.subr.mxu0 0.0
        %v1130 = vand.u32 %v317, 4294901760
        %v1131 = vsub.f32 %v317, %v1130
        %v1132 = vand.u32 %v1131, 4294901760
        %v1133 = vsub.f32 %v1131, %v1132
        %v1134 = vand.u32 %v1133, 4294901760
        %1135 = vmatpush1.msra.mxu0 %v1134
        %1136 = vmatprep.subr.mxu0 0.0
        %v1137 = vand.u32 %v318, 4294901760
        %v1138 = vsub.f32 %v318, %v1137
        %v1139 = vand.u32 %v1138, 4294901760
        %v1140 = vsub.f32 %v1138, %v1139
        %v1141 = vand.u32 %v1140, 4294901760
        %1142 = vmatpush1.msra.mxu0 %v1141
        %1143 = vmatprep.subr.mxu0 0.0
        %v1144 = vand.u32 %v319, 4294901760
        %v1145 = vsub.f32 %v319, %v1144
        %v1146 = vand.u32 %v1145, 4294901760
        %v1147 = vsub.f32 %v1145, %v1146
        %v1148 = vand.u32 %v1147, 4294901760
        %1149 = vmatpush1.msra.mxu0 %v1148
        %1150 = vmatprep.subr.mxu0 0.0
        %v1151 = vand.u32 %v320, 4294901760
        %v1152 = vsub.f32 %v320, %v1151
        %v1153 = vand.u32 %v1152, 4294901760
        %v1154 = vsub.f32 %v1152, %v1153
        %v1155 = vand.u32 %v1154, 4294901760
        %1156 = vmatpush1.msra.mxu0 %v1155
        %1157 = vmatprep.subr.mxu0 0.0
        %v1158 = vand.u32 %v321, 4294901760
        %v1159 = vsub.f32 %v321, %v1158
        %v1160 = vand.u32 %v1159, 4294901760
        %v1161 = vsub.f32 %v1159, %v1160
        %v1162 = vand.u32 %v1161, 4294901760
        %1163 = vmatpush1.msra.mxu0 %v1162
        %1164 = vmatprep.subr.mxu0 0.0
        %v1165 = vand.u32 %v322, 4294901760
        %v1166 = vsub.f32 %v322, %v1165
        %v1167 = vand.u32 %v1166, 4294901760
        %v1168 = vsub.f32 %v1166, %v1167
        %v1169 = vand.u32 %v1168, 4294901760
        %1170 = vmatpush1.msra.mxu0 %v1169
        %1171 = vmatprep.subr.mxu0 0.0
        %v1172 = vand.u32 %v323, 4294901760
        %v1173 = vsub.f32 %v323, %v1172
        %v1174 = vand.u32 %v1173, 4294901760
        %v1175 = vsub.f32 %v1173, %v1174
        %v1176 = vand.u32 %v1175, 4294901760
        %1177 = vmatpush1.msra.mxu0 %v1176
        %1178 = vmatprep.subr.mxu0 0.0
        %v1179 = vand.u32 %v324, 4294901760
        %v1180 = vsub.f32 %v324, %v1179
        %v1181 = vand.u32 %v1180, 4294901760
        %v1182 = vsub.f32 %v1180, %v1181
        %v1183 = vand.u32 %v1182, 4294901760
        %1184 = vmatpush1.msra.mxu0 %v1183
        %1185 = vmatprep.subr.mxu0 0.0
        %1186 = vmatpush1.msra.mxu0 0.0
        %1187 = vmatprep.subr.mxu0 0.0
        %1188 = vmatpush1.msra.mxu0 0.0
        %1189 = vmatprep.subr.mxu0 0.0
        %1190 = vmatpush1.msra.mxu0 0.0
        %1191 = vmatprep.subr.mxu0 0.0
        %1192 = vmatpush1.msra.mxu0 0.0
        %1193 = vmatprep.subr.mxu0 0.0
        %1194 = vmatpush1.msra.mxu0 0.0
        %1195 = vmatprep.subr.mxu0 0.0
        %1196 = vmatpush1.msra.mxu0 0.0
        %1197 = vmatprep.subr.mxu0 0.0
        %1198 = vmatpush1.msra.mxu0 0.0
        %1199 = vmatprep.subr.mxu0 0.0
        %1200 = vmatpush1.msra.mxu0 0.0
        %1201 = vmatprep.subr.mxu0 0.0
        %1202 = vmatpush1.msra.mxu0 0.0
        %1203 = vmatprep.subr.mxu0 0.0
        %1204 = vmatpush1.msra.mxu0 0.0
        %1205 = vmatprep.subr.mxu0 0.0
        %1206 = vmatpush1.msra.mxu0 0.0
        %1207 = vmatprep.subr.mxu0 0.0
        %1208 = vmatpush1.msra.mxu0 0.0
        %1209 = vmatprep.subr.mxu0 0.0
        %1210 = vmatpush1.msra.mxu0 0.0
        %1211 = vmatprep.subr.mxu0 0.0
        %1212 = vmatpush1.msra.mxu0 0.0
        %1213 = vmatprep.subr.mxu0 0.0
        %1214 = vmatpush1.msra.mxu0 0.0
        %1215 = vmatprep.subr.mxu0 0.0
        %1216 = vmatpush1.msra.mxu0 0.0
        %1217 = vmatprep.mubr.f32.mxu0 0.0
        %v1218 = vand.u32 %v307, 4294901760
        %1219 = vmatmul.mubr.f32.gmra.mrb[0].mxu0 %v1218
        %v1220 = vpop.f32.mrb[0].mxu0
        %v1221 = vadd.f32 %v1070, %v1220
        %v1222 = vpop.f32.mrb[0].mxu0
        %1223 = vdwg.mxu0
        %1224 = vmatprep.subr.mxu0 0.0
        %v1225 = vand.u32 %v309, 4294901760
        %v1226 = vsub.f32 %v309, %v1225
        %1227 = vmatpush1.msra.mxu0 %v1226
        %1228 = vmatprep.subr.mxu0 0.0
        %v1229 = vand.u32 %v310, 4294901760
        %v1230 = vsub.f32 %v310, %v1229
        %1231 = vmatpush1.msra.mxu0 %v1230
        %1232 = vmatprep.subr.mxu0 0.0
        %v1233 = vand.u32 %v311, 4294901760
        %v1234 = vsub.f32 %v311, %v1233
        %1235 = vmatpush1.msra.mxu0 %v1234
        %1236 = vmatprep.subr.mxu0 0.0
        %v1237 = vand.u32 %v312, 4294901760
        %v1238 = vsub.f32 %v312, %v1237
        %1239 = vmatpush1.msra.mxu0 %v1238
        %1240 = vmatprep.subr.mxu0 0.0
        %v1241 = vand.u32 %v313, 4294901760
        %v1242 = vsub.f32 %v313, %v1241
        %1243 = vmatpush1.msra.mxu0 %v1242
        %1244 = vmatprep.subr.mxu0 0.0
        %v1245 = vand.u32 %v314, 4294901760
        %v1246 = vsub.f32 %v314, %v1245
        %1247 = vmatpush1.msra.mxu0 %v1246
        %1248 = vmatprep.subr.mxu0 0.0
        %v1249 = vand.u32 %v315, 4294901760
        %v1250 = vsub.f32 %v315, %v1249
        %1251 = vmatpush1.msra.mxu0 %v1250
        %1252 = vmatprep.subr.mxu0 0.0
        %v1253 = vand.u32 %v316, 4294901760
        %v1254 = vsub.f32 %v316, %v1253
        %1255 = vmatpush1.msra.mxu0 %v1254
        %1256 = vmatprep.subr.mxu0 0.0
        %v1257 = vand.u32 %v317, 4294901760
        %v1258 = vsub.f32 %v317, %v1257
        %1259 = vmatpush1.msra.mxu0 %v1258
        %1260 = vmatprep.subr.mxu0 0.0
        %v1261 = vand.u32 %v318, 4294901760
        %v1262 = vsub.f32 %v318, %v1261
        %1263 = vmatpush1.msra.mxu0 %v1262
        %1264 = vmatprep.subr.mxu0 0.0
        %v1265 = vand.u32 %v319, 4294901760
        %v1266 = vsub.f32 %v319, %v1265
        %1267 = vmatpush1.msra.mxu0 %v1266
        %1268 = vmatprep.subr.mxu0 0.0
        %v1269 = vand.u32 %v320, 4294901760
        %v1270 = vsub.f32 %v320, %v1269
        %1271 = vmatpush1.msra.mxu0 %v1270
        %1272 = vmatprep.subr.mxu0 0.0
        %v1273 = vand.u32 %v321, 4294901760
        %v1274 = vsub.f32 %v321, %v1273
        %1275 = vmatpush1.msra.mxu0 %v1274
        %1276 = vmatprep.subr.mxu0 0.0
        %v1277 = vand.u32 %v322, 4294901760
        %v1278 = vsub.f32 %v322, %v1277
        %1279 = vmatpush1.msra.mxu0 %v1278
        %1280 = vmatprep.subr.mxu0 0.0
        %v1281 = vand.u32 %v323, 4294901760
        %v1282 = vsub.f32 %v323, %v1281
        %1283 = vmatpush1.msra.mxu0 %v1282
        %1284 = vmatprep.subr.mxu0 0.0
        %v1285 = vand.u32 %v324, 4294901760
        %v1286 = vsub.f32 %v324, %v1285
        %1287 = vmatpush1.msra.mxu0 %v1286
        %1288 = vmatprep.subr.mxu0 0.0
        %1289 = vmatpush1.msra.mxu0 0.0
        %1290 = vmatprep.subr.mxu0 0.0
        %1291 = vmatpush1.msra.mxu0 0.0
        %1292 = vmatprep.subr.mxu0 0.0
        %1293 = vmatpush1.msra.mxu0 0.0
        %1294 = vmatprep.subr.mxu0 0.0
        %1295 = vmatpush1.msra.mxu0 0.0
        %1296 = vmatprep.subr.mxu0 0.0
        %1297 = vmatpush1.msra.mxu0 0.0
        %1298 = vmatprep.subr.mxu0 0.0
        %1299 = vmatpush1.msra.mxu0 0.0
        %1300 = vmatprep.subr.mxu0 0.0
        %1301 = vmatpush1.msra.mxu0 0.0
        %1302 = vmatprep.subr.mxu0 0.0
        %1303 = vmatpush1.msra.mxu0 0.0
        %1304 = vmatprep.subr.mxu0 0.0
        %1305 = vmatpush1.msra.mxu0 0.0
        %1306 = vmatprep.subr.mxu0 0.0
        %1307 = vmatpush1.msra.mxu0 0.0
        %1308 = vmatprep.subr.mxu0 0.0
        %1309 = vmatpush1.msra.mxu0 0.0
        %1310 = vmatprep.subr.mxu0 0.0
        %1311 = vmatpush1.msra.mxu0 0.0
        %1312 = vmatprep.subr.mxu0 0.0
        %1313 = vmatpush1.msra.mxu0 0.0
        %1314 = vmatprep.subr.mxu0 0.0
        %1315 = vmatpush1.msra.mxu0 0.0
        %1316 = vmatprep.subr.mxu0 0.0
        %1317 = vmatpush1.msra.mxu0 0.0
        %1318 = vmatprep.subr.mxu0 0.0
        %1319 = vmatpush1.msra.mxu0 0.0
        %1320 = vmatprep.mubr.f32.mxu0 0.0
        %v1321 = vand.u32 %v307, 4294901760
        %v1322 = vsub.f32 %v307, %v1321
        %1323 = vmatmul.mubr.f32.gmra.mrb[0].mxu0 %v1322
        %v1324 = vpop.f32.mrb[0].mxu0
        %v1325 = vadd.f32 %v1221, %v1324
        %v1326 = vpop.f32.mrb[0].mxu0
        %1327 = vdwg.mxu0
        %1328 = vmatprep.subr.mxu0 0.0
        %v1329 = vand.u32 %v309, 4294901760
        %1330 = vmatpush1.msra.mxu0 %v1329
        %1331 = vmatprep.subr.mxu0 0.0
        %v1332 = vand.u32 %v310, 4294901760
        %1333 = vmatpush1.msra.mxu0 %v1332
        %1334 = vmatprep.subr.mxu0 0.0
        %v1335 = vand.u32 %v311, 4294901760
        %1336 = vmatpush1.msra.mxu0 %v1335
        %1337 = vmatprep.subr.mxu0 0.0
        %v1338 = vand.u32 %v312, 4294901760
        %1339 = vmatpush1.msra.mxu0 %v1338
        %1340 = vmatprep.subr.mxu0 0.0
        %v1341 = vand.u32 %v313, 4294901760
        %1342 = vmatpush1.msra.mxu0 %v1341
        %1343 = vmatprep.subr.mxu0 0.0
        %v1344 = vand.u32 %v314, 4294901760
        %1345 = vmatpush1.msra.mxu0 %v1344
        %1346 = vmatprep.subr.mxu0 0.0
        %v1347 = vand.u32 %v315, 4294901760
        %1348 = vmatpush1.msra.mxu0 %v1347
        %1349 = vmatprep.subr.mxu0 0.0
        %v1350 = vand.u32 %v316, 4294901760
        %1351 = vmatpush1.msra.mxu0 %v1350
        %1352 = vmatprep.subr.mxu0 0.0
        %v1353 = vand.u32 %v317, 4294901760
        %1354 = vmatpush1.msra.mxu0 %v1353
        %1355 = vmatprep.subr.mxu0 0.0
        %v1356 = vand.u32 %v318, 4294901760
        %1357 = vmatpush1.msra.mxu0 %v1356
        %1358 = vmatprep.subr.mxu0 0.0
        %v1359 = vand.u32 %v319, 4294901760
        %1360 = vmatpush1.msra.mxu0 %v1359
        %1361 = vmatprep.subr.mxu0 0.0
        %v1362 = vand.u32 %v320, 4294901760
        %1363 = vmatpush1.msra.mxu0 %v1362
        %1364 = vmatprep.subr.mxu0 0.0
        %v1365 = vand.u32 %v321, 4294901760
        %1366 = vmatpush1.msra.mxu0 %v1365
        %1367 = vmatprep.subr.mxu0 0.0
        %v1368 = vand.u32 %v322, 4294901760
        %1369 = vmatpush1.msra.mxu0 %v1368
        %1370 = vmatprep.subr.mxu0 0.0
        %v1371 = vand.u32 %v323, 4294901760
        %1372 = vmatpush1.msra.mxu0 %v1371
        %1373 = vmatprep.subr.mxu0 0.0
        %v1374 = vand.u32 %v324, 4294901760
        %1375 = vmatpush1.msra.mxu0 %v1374
        %1376 = vmatprep.subr.mxu0 0.0
        %1377 = vmatpush1.msra.mxu0 0.0
        %1378 = vmatprep.subr.mxu0 0.0
        %1379 = vmatpush1.msra.mxu0 0.0
        %1380 = vmatprep.subr.mxu0 0.0
        %1381 = vmatpush1.msra.mxu0 0.0
        %1382 = vmatprep.subr.mxu0 0.0
        %1383 = vmatpush1.msra.mxu0 0.0
        %1384 = vmatprep.subr.mxu0 0.0
        %1385 = vmatpush1.msra.mxu0 0.0
        %1386 = vmatprep.subr.mxu0 0.0
        %1387 = vmatpush1.msra.mxu0 0.0
        %1388 = vmatprep.subr.mxu0 0.0
        %1389 = vmatpush1.msra.mxu0 0.0
        %1390 = vmatprep.subr.mxu0 0.0
        %1391 = vmatpush1.msra.mxu0 0.0
        %1392 = vmatprep.subr.mxu0 0.0
        %1393 = vmatpush1.msra.mxu0 0.0
        %1394 = vmatprep.subr.mxu0 0.0
        %1395 = vmatpush1.msra.mxu0 0.0
        %1396 = vmatprep.subr.mxu0 0.0
        %1397 = vmatpush1.msra.mxu0 0.0
        %1398 = vmatprep.subr.mxu0 0.0
        %1399 = vmatpush1.msra.mxu0 0.0
        %1400 = vmatprep.subr.mxu0 0.0
        %1401 = vmatpush1.msra.mxu0 0.0
        %1402 = vmatprep.subr.mxu0 0.0
        %1403 = vmatpush1.msra.mxu0 0.0
        %1404 = vmatprep.subr.mxu0 0.0
        %1405 = vmatpush1.msra.mxu0 0.0
        %1406 = vmatprep.subr.mxu0 0.0
        %1407 = vmatpush1.msra.mxu0 0.0
        %1408 = vmatprep.mubr.f32.mxu0 0.0
        %v1409 = vand.u32 %v307, 4294901760
        %v1410 = vsub.f32 %v307, %v1409
        %v1411 = vand.u32 %v1410, 4294901760
        %1412 = vmatmul.mubr.f32.gmra.mrb[0].mxu0 %v1411
        %v1413 = vpop.f32.mrb[0].mxu0
        %v1414 = vadd.f32 %v1325, %v1413
        %v1415 = vpop.f32.mrb[0].mxu0
        %1416 = vdwg.mxu0
        %1417 = vmatprep.subr.mxu0 0.0
        %v1418 = vand.u32 %v309, 4294901760
        %v1419 = vsub.f32 %v309, %v1418
        %v1420 = vand.u32 %v1419, 4294901760
        %1421 = vmatpush1.msra.mxu0 %v1420
        %1422 = vmatprep.subr.mxu0 0.0
        %v1423 = vand.u32 %v310, 4294901760
        %v1424 = vsub.f32 %v310, %v1423
        %v1425 = vand.u32 %v1424, 4294901760
        %1426 = vmatpush1.msra.mxu0 %v1425
        %1427 = vmatprep.subr.mxu0 0.0
        %v1428 = vand.u32 %v311, 4294901760
        %v1429 = vsub.f32 %v311, %v1428
        %v1430 = vand.u32 %v1429, 4294901760
        %1431 = vmatpush1.msra.mxu0 %v1430
        %1432 = vmatprep.subr.mxu0 0.0
        %v1433 = vand.u32 %v312, 4294901760
        %v1434 = vsub.f32 %v312, %v1433
        %v1435 = vand.u32 %v1434, 4294901760
        %1436 = vmatpush1.msra.mxu0 %v1435
        %1437 = vmatprep.subr.mxu0 0.0
        %v1438 = vand.u32 %v313, 4294901760
        %v1439 = vsub.f32 %v313, %v1438
        %v1440 = vand.u32 %v1439, 4294901760
        %1441 = vmatpush1.msra.mxu0 %v1440
        %1442 = vmatprep.subr.mxu0 0.0
        %v1443 = vand.u32 %v314, 4294901760
        %v1444 = vsub.f32 %v314, %v1443
        %v1445 = vand.u32 %v1444, 4294901760
        %1446 = vmatpush1.msra.mxu0 %v1445
        %1447 = vmatprep.subr.mxu0 0.0
        %v1448 = vand.u32 %v315, 4294901760
        %v1449 = vsub.f32 %v315, %v1448
        %v1450 = vand.u32 %v1449, 4294901760
        %1451 = vmatpush1.msra.mxu0 %v1450
        %1452 = vmatprep.subr.mxu0 0.0
        %v1453 = vand.u32 %v316, 4294901760
        %v1454 = vsub.f32 %v316, %v1453
        %v1455 = vand.u32 %v1454, 4294901760
        %1456 = vmatpush1.msra.mxu0 %v1455
        %1457 = vmatprep.subr.mxu0 0.0
        %v1458 = vand.u32 %v317, 4294901760
        %v1459 = vsub.f32 %v317, %v1458
        %v1460 = vand.u32 %v1459, 4294901760
        %1461 = vmatpush1.msra.mxu0 %v1460
        %1462 = vmatprep.subr.mxu0 0.0
        %v1463 = vand.u32 %v318, 4294901760
        %v1464 = vsub.f32 %v318, %v1463
        %v1465 = vand.u32 %v1464, 4294901760
        %1466 = vmatpush1.msra.mxu0 %v1465
        %1467 = vmatprep.subr.mxu0 0.0
        %v1468 = vand.u32 %v319, 4294901760
        %v1469 = vsub.f32 %v319, %v1468
        %v1470 = vand.u32 %v1469, 4294901760
        %1471 = vmatpush1.msra.mxu0 %v1470
        %1472 = vmatprep.subr.mxu0 0.0
        %v1473 = vand.u32 %v320, 4294901760
        %v1474 = vsub.f32 %v320, %v1473
        %v1475 = vand.u32 %v1474, 4294901760
        %1476 = vmatpush1.msra.mxu0 %v1475
        %1477 = vmatprep.subr.mxu0 0.0
        %v1478 = vand.u32 %v321, 4294901760
        %v1479 = vsub.f32 %v321, %v1478
        %v1480 = vand.u32 %v1479, 4294901760
        %1481 = vmatpush1.msra.mxu0 %v1480
        %1482 = vmatprep.subr.mxu0 0.0
        %v1483 = vand.u32 %v322, 4294901760
        %v1484 = vsub.f32 %v322, %v1483
        %v1485 = vand.u32 %v1484, 4294901760
        %1486 = vmatpush1.msra.mxu0 %v1485
        %1487 = vmatprep.subr.mxu0 0.0
        %v1488 = vand.u32 %v323, 4294901760
        %v1489 = vsub.f32 %v323, %v1488
        %v1490 = vand.u32 %v1489, 4294901760
        %1491 = vmatpush1.msra.mxu0 %v1490
        %1492 = vmatprep.subr.mxu0 0.0
        %v1493 = vand.u32 %v324, 4294901760
        %v1494 = vsub.f32 %v324, %v1493
        %v1495 = vand.u32 %v1494, 4294901760
        %1496 = vmatpush1.msra.mxu0 %v1495
        %1497 = vmatprep.subr.mxu0 0.0
        %1498 = vmatpush1.msra.mxu0 0.0
        %1499 = vmatprep.subr.mxu0 0.0
        %1500 = vmatpush1.msra.mxu0 0.0
        %1501 = vmatprep.subr.mxu0 0.0
        %1502 = vmatpush1.msra.mxu0 0.0
        %1503 = vmatprep.subr.mxu0 0.0
        %1504 = vmatpush1.msra.mxu0 0.0
        %1505 = vmatprep.subr.mxu0 0.0
        %1506 = vmatpush1.msra.mxu0 0.0
        %1507 = vmatprep.subr.mxu0 0.0
        %1508 = vmatpush1.msra.mxu0 0.0
        %1509 = vmatprep.subr.mxu0 0.0
        %1510 = vmatpush1.msra.mxu0 0.0
        %1511 = vmatprep.subr.mxu0 0.0
        %1512 = vmatpush1.msra.mxu0 0.0
        %1513 = vmatprep.subr.mxu0 0.0
        %1514 = vmatpush1.msra.mxu0 0.0
        %1515 = vmatprep.subr.mxu0 0.0
        %1516 = vmatpush1.msra.mxu0 0.0
        %1517 = vmatprep.subr.mxu0 0.0
        %1518 = vmatpush1.msra.mxu0 0.0
        %1519 = vmatprep.subr.mxu0 0.0
        %1520 = vmatpush1.msra.mxu0 0.0
        %1521 = vmatprep.subr.mxu0 0.0
        %1522 = vmatpush1.msra.mxu0 0.0
        %1523 = vmatprep.subr.mxu0 0.0
        %1524 = vmatpush1.msra.mxu0 0.0
        %1525 = vmatprep.subr.mxu0 0.0
        %1526 = vmatpush1.msra.mxu0 0.0
        %1527 = vmatprep.subr.mxu0 0.0
        %1528 = vmatpush1.msra.mxu0 0.0
        %1529 = vmatprep.mubr.f32.mxu0 0.0
        %v1530 = vand.u32 %v307, 4294901760
        %1531 = vmatmul.mubr.f32.gmra.mrb[0].mxu0 %v1530
        %v1532 = vpop.f32.mrb[0].mxu0
        %v1533 = vadd.f32 %v1414, %v1532
        %v1534 = vpop.f32.mrb[0].mxu0
        %1535 = vdwg.mxu0
        %1536 = vmatprep.subr.mxu0 0.0
        %v1537 = vand.u32 %v309, 4294901760
        %1538 = vmatpush1.msra.mxu0 %v1537
        %1539 = vmatprep.subr.mxu0 0.0
        %v1540 = vand.u32 %v310, 4294901760
        %1541 = vmatpush1.msra.mxu0 %v1540
        %1542 = vmatprep.subr.mxu0 0.0
        %v1543 = vand.u32 %v311, 4294901760
        %1544 = vmatpush1.msra.mxu0 %v1543
        %1545 = vmatprep.subr.mxu0 0.0
        %v1546 = vand.u32 %v312, 4294901760
        %1547 = vmatpush1.msra.mxu0 %v1546
        %1548 = vmatprep.subr.mxu0 0.0
        %v1549 = vand.u32 %v313, 4294901760
        %1550 = vmatpush1.msra.mxu0 %v1549
        %1551 = vmatprep.subr.mxu0 0.0
        %v1552 = vand.u32 %v314, 4294901760
        %1553 = vmatpush1.msra.mxu0 %v1552
        %1554 = vmatprep.subr.mxu0 0.0
        %v1555 = vand.u32 %v315, 4294901760
        %1556 = vmatpush1.msra.mxu0 %v1555
        %1557 = vmatprep.subr.mxu0 0.0
        %v1558 = vand.u32 %v316, 4294901760
        %1559 = vmatpush1.msra.mxu0 %v1558
        %1560 = vmatprep.subr.mxu0 0.0
        %v1561 = vand.u32 %v317, 4294901760
        %1562 = vmatpush1.msra.mxu0 %v1561
        %1563 = vmatprep.subr.mxu0 0.0
        %v1564 = vand.u32 %v318, 4294901760
        %1565 = vmatpush1.msra.mxu0 %v1564
        %1566 = vmatprep.subr.mxu0 0.0
        %v1567 = vand.u32 %v319, 4294901760
        %1568 = vmatpush1.msra.mxu0 %v1567
        %1569 = vmatprep.subr.mxu0 0.0
        %v1570 = vand.u32 %v320, 4294901760
        %1571 = vmatpush1.msra.mxu0 %v1570
        %1572 = vmatprep.subr.mxu0 0.0
        %v1573 = vand.u32 %v321, 4294901760
        %1574 = vmatpush1.msra.mxu0 %v1573
        %1575 = vmatprep.subr.mxu0 0.0
        %v1576 = vand.u32 %v322, 4294901760
        %1577 = vmatpush1.msra.mxu0 %v1576
        %1578 = vmatprep.subr.mxu0 0.0
        %v1579 = vand.u32 %v323, 4294901760
        %1580 = vmatpush1.msra.mxu0 %v1579
        %1581 = vmatprep.subr.mxu0 0.0
        %v1582 = vand.u32 %v324, 4294901760
        %1583 = vmatpush1.msra.mxu0 %v1582
        %1584 = vmatprep.subr.mxu0 0.0
        %1585 = vmatpush1.msra.mxu0 0.0
        %1586 = vmatprep.subr.mxu0 0.0
        %1587 = vmatpush1.msra.mxu0 0.0
        %1588 = vmatprep.subr.mxu0 0.0
        %1589 = vmatpush1.msra.mxu0 0.0
        %1590 = vmatprep.subr.mxu0 0.0
        %1591 = vmatpush1.msra.mxu0 0.0
        %1592 = vmatprep.subr.mxu0 0.0
        %1593 = vmatpush1.msra.mxu0 0.0
        %1594 = vmatprep.subr.mxu0 0.0
        %1595 = vmatpush1.msra.mxu0 0.0
        %1596 = vmatprep.subr.mxu0 0.0
        %1597 = vmatpush1.msra.mxu0 0.0
        %1598 = vmatprep.subr.mxu0 0.0
        %1599 = vmatpush1.msra.mxu0 0.0
        %1600 = vmatprep.subr.mxu0 0.0
        %1601 = vmatpush1.msra.mxu0 0.0
        %1602 = vmatprep.subr.mxu0 0.0
        %1603 = vmatpush1.msra.mxu0 0.0
        %1604 = vmatprep.subr.mxu0 0.0
        %1605 = vmatpush1.msra.mxu0 0.0
        %1606 = vmatprep.subr.mxu0 0.0
        %1607 = vmatpush1.msra.mxu0 0.0
        %1608 = vmatprep.subr.mxu0 0.0
        %1609 = vmatpush1.msra.mxu0 0.0
        %1610 = vmatprep.subr.mxu0 0.0
        %1611 = vmatpush1.msra.mxu0 0.0
        %1612 = vmatprep.subr.mxu0 0.0
        %1613 = vmatpush1.msra.mxu0 0.0
        %1614 = vmatprep.subr.mxu0 0.0
        %1615 = vmatpush1.msra.mxu0 0.0
        %1616 = vmatprep.mubr.f32.mxu0 0.0
        %v1617 = vand.u32 %v307, 4294901760
        %1618 = vmatmul.mubr.f32.gmra.mrb[0].mxu0 %v1617
        %v1619 = vpop.f32.mrb[0].mxu0
        %v1620 = vadd.f32 %v1533, %v1619
        %v1621 = vpop.f32.mrb[0].mxu0
        %1622 = vdwg.mxu0
        %s1623 = sld [smem:[#allocation2]]
        %v1624 = vstv %s1623
        %v1625 = vadd.f32 %v1620, %v1624
        %v1626 = vxor.u32 %v1625, 2147483648
        %v1627 = vmul.f32 %v1626, 1.442695
        %v1628 = vpow.pop %v1627
        %v1629 = vadd.f32 %v1628, 1.0
        %v1630 = vrcp.pop %v1629
        %v1631 = vmul.f32 1.0, %v1630
        %v1632 = vmul.f32 %v1631, %v307
        %v1633 = vsub.f32 1.0, %v1631
        %v1634 = vmul.f32 %v1633, %v308
        %v1635 = vadd.f32 %v1632, %v1634
        %1636 = vst [vmem:[%s306] sm:$0xff] %v1635
        %s1637 = sand.u32 %s150, 1
        %s1638 = scalar_lea.sflag [#allocation5], %s1637
        %s1639 = sand.u32 %s150, 1
        %s1640 = smul.addr %s1639, 8
        %s1641 = scalar_lea.vmem [#allocation11], %s1640
        // Predicated region
        $region57: #{tpu_custom_call.1} parent=39 // pred_check
          %p1642 = pneg %p160
        $region58: #{tpu_custom_call.1} parent=39 // pred_check_branch
          %1644 = sbr.rel (%p1642) target = $region60
        $region59: #{tpu_custom_call.1} parent=39 // pred_region
          %s1646 = ssub.s32 128, 128
          %1647 = vsyncadd %s1638, %s1646
          %s1648 = smul.addr %s27, 128
          %s1649 = scalar_lea.hbm %s5, %s1648
          %s1651 = sshll.u32 %s1641, 4
          %s1652 = int_to_ptr.vmem [resolvable:$true] %s1651
          %1654 = dma.vmem_to_hbm [thread:$0]  %s1652, 128, %s1649, %s1638
        $region60: #{tpu_custom_call.1} parent=39 // pred_fallthru
          _
      $region40: #{tpu_custom_call.1} parent=5 // pred_fallthru
        _
      %p1655 = scmp.le.s32.totalorder 2, %s22
      // Predicated region
      $region61: #{tpu_custom_call.1} parent=5 // pred_check
        %p1656 = pneg %p1655
      $region62: #{tpu_custom_call.1} parent=5 // pred_check_branch
        %1658 = sbr.rel (%p1656) target = $region64
      $region63: #{tpu_custom_call.1} parent=5 // pred_region
        %s1659 = ssub.s32 %s22, 2
        // Predicated region
        $region65: #{tpu_custom_call.1} parent=63 // pred_check
          %p1660 = pneg %p166
        $region66: #{tpu_custom_call.1} parent=63 // pred_check_branch
          %1662 = sbr.rel (%p1660) target = $region68
        $region67: #{tpu_custom_call.1} parent=63 // pred_region
          %s1663 = sand.u32 %s151, 1
          %s1664 = scalar_lea.sflag [#allocation5], %s1663
          %s1665 = sand.u32 %s151, 1
          %s1666 = smul.addr %s1665, 8
          %s1667 = scalar_lea.vmem [#allocation11], %s1666
          %1668 = dma.done %s1664, 128
        $region68: #{tpu_custom_call.1} parent=63 // pred_fallthru
          _
      $region64: #{tpu_custom_call.1} parent=5 // pred_fallthru
        _
    $region6: #{tpu_custom_call.1} parent=1 // loop_footer
      %s26 = sadd.s32 1, %s22
    $region7: #{tpu_custom_call.1} parent=1 // loop_footer_branch
      %21 = sbr.rel target = $region3
    $region8: #{tpu_custom_call.1} parent=1 // loop_exit
      _
    %1669 = vsyncpa [#allocation4], 1
    %s1670 = scalar_lea.sflag [#allocation4], 1
    %1671 = vsyncpa %s1670, 1
    %1672 = vsyncpa [#allocation7], 1
    %s1673 = scalar_lea.sflag [#allocation7], 1
    %1674 = vsyncpa %s1673, 1
    %1675 = vsyncpa [#allocation10], 1
    %1676 = vsyncpa [#allocation5], 1
    %s1677 = scalar_lea.sflag [#allocation5], 1
    %1678 = vsyncpa %s1677, 1

</llo_original>
